<compile_context>
chip_gen: v6e
topology: v6e:2x2x1
jax: 0.10.0
libtpu: 0.0.40
codegen_flags: <defaults>
</compile_context>

<pallas_src>
import numpy as np
import jax
import jax.numpy as jnp
from jax import lax
from jax.experimental import pallas as pl
from jax.experimental.pallas import tpu as pltpu

N    = 2      # batch
LIN  = 324    # input length -> conv1(k=4,p=2): 325 -> pool: 162 -> conv2(k=6,p=3): 163 -> pool: 81
C1   = 8      # conv1 out channels
K1   = 4      # conv1 kernel size
C2   = 16     # conv2 out channels
K2   = 6      # conv2 kernel size
P1   = 162    # pool1 output length
P2   = 81     # pool2 output length
FEAT = C2 * P2   # 1296 flattened features (matches nn.Linear(1296, 81))
H1   = 81     # linear1 out features
OUT  = 5      # linear2 out features


def net_kernel(s_ref, w1_ref, b1_ref, w2m_ref, b2_ref,
               w1t_ref, bl1_ref, wl2t_ref, bl2_ref, out_ref):
    f32 = jnp.float32

    # s_ref: (7, N, 1, P2) stride-4 phases of the padded input, s[t,n,0,u] = xpad[n, 4u+t]
    S  = s_ref[...]
    w1 = w1_ref[...]                                            # (C1, K1)
    # hoisted broadcasts, each reused by the even- and odd-position correlations
    w1b = [w1[:, k:k + 1][None, :, :] for k in range(K1)]       # (1, C1, 1) each
    Sb  = [S[t] for t in range(2 * K1 - 1)]                     # (N, 1, P2) each

    # ---- conv1 + ReLU + maxpool1d(2), fused -------------------------------------
    # conv1 output at position 4u+d = sum_k w1[:,k] * xpad[4u+d+k]; the pooled pairs
    # (2j, 2j+1) only ever need the correlations at offsets d = 0..3.
    def corr(d):                                                # (N, C1, P2)
        acc = w1b[0] * Sb[d]
        for k in range(1, K1):
            acc = acc + w1b[k] * Sb[d + k]
        return acc

    b1b = b1_ref[...][None, :, :]                               # (1, C1, 1)
    pe = jnp.maximum(jnp.maximum(corr(0), corr(1)) + b1b, 0.0)  # pool1 rows at even j
    po = jnp.maximum(jnp.maximum(corr(2), corr(3)) + b1b, 0.0)  # pool1 rows at odd  j

    # ---- conv2 + ReLU + maxpool1d(2) as ONE im2col matmul -----------------------
    # De-interleaved, zero-padded (pad=3) conv2 input streams:
    #   aev[i] = p1pad[2i]   = [0, 0, po, 0]      aod[i] = p1pad[2i+1] = [0, pe, 0, 0]
    z1 = jnp.zeros((N, C1, 1), f32)
    z2 = jnp.zeros((N, C1, 2), f32)
    aev = jnp.concatenate([z2, po, z1], axis=-1)                # (N, C1, 84)
    aod = jnp.concatenate([z1, pe, z2], axis=-1)                # (N, C1, 84)
    # U[t][n, c, j] = p1pad[n, c, 2j + t], t = 0..6 — unit-stride windows only.
    U = [(aev if t % 2 == 0 else aod)[:, :, t // 2: t // 2 + P2]
         for t in range(K2 + 1)]

    # im2col RHS: rows = (tap k, in-channel c), lanes = (batch n, parity d, position j)
    cols = []
    for n in range(N):
        for d in range(2):
            cols.append(jnp.concatenate([U[k + d][n] for k in range(K2)], axis=0))  # (48, P2)
    rhs = jnp.concatenate(cols, axis=1)                         # (48, N*2*P2 = 324)
    conv2 = jnp.dot(w2m_ref[...], rhs, preferred_element_type=f32)  # (C2, 324)

    b2 = b2_ref[...]                                            # (C2, 1)
    # ---- pool2 + ReLU + channel-major flatten -> (N, 1296) ----------------------
    frows = []
    for n in range(N):
        e = conv2[:, (2 * n) * P2:(2 * n + 1) * P2]             # conv2 at even positions
        o = conv2[:, (2 * n + 1) * P2:(2 * n + 2) * P2]         # conv2 at odd positions
        p2n = jnp.maximum(jnp.maximum(e, o) + b2, 0.0)          # (C2, P2)
        frows.append(jnp.concatenate([p2n[c:c + 1, :] for c in range(C2)], axis=1))
    feat = jnp.concatenate(frows, axis=0)                       # (N, 1296)

    # ---- linear1 + linear2 (single MXU matmuls) ---------------------------------
    y1 = jnp.dot(feat, w1t_ref[...], preferred_element_type=f32) + bl1_ref[...]
    out_ref[...] = jnp.dot(y1, wl2t_ref[...], preferred_element_type=f32) + bl2_ref[...]


def prepare_params(params):
    """One-time re-layout of PyTorch-style parameters into kernel layout (not per-call)."""
    w1, b1, w2, b2, wl1, bl1, wl2, bl2 = params
    w1k  = w1[:, 0, :]                                          # (C1, K1)
    b1k  = b1[:, None]                                          # (C1, 1)
    w2m  = jnp.transpose(w2, (0, 2, 1)).reshape(C2, K2 * C1)    # (C2, 48): col = k*C1 + c
    b2k  = b2[:, None]                                          # (C2, 1)
    w1t  = wl1.T                                                # (1296, H1)
    bl1k = bl1[None, :]                                         # (1, H1)
    wl2t = wl2.T                                                # (H1, OUT)
    bl2k = bl2[None, :]                                         # (1, OUT)
    return (w1k, b1k, w2m, b2k, w1t, bl1k, wl2t, bl2k)


@jax.jit
def net_forward(x, kparams):
    """x: (N, 1, LIN) float32, NCW like PyTorch. Returns (N, OUT)."""
    xp = jnp.pad(x[:, 0, :], ((0, 0), (2, 2)))                  # (N, LIN + 4)
    # stride-4 phases of the padded input (tiny layout glue feeding fused conv1+pool1)
    s = jnp.stack([xp[:, t:t + 4 * (P2 - 1) + 1:4] for t in range(2 * K1 - 1)])  # (7, N, P2)
    s = s[:, :, None, :]                                        # (7, N, 1, P2)
    # NOTE: for larger batches, add a grid over batch with
    # dimension_semantics=("parallel",) so v7x's two TensorCores split the work.
    return pl.pallas_call(
        net_kernel,
        out_shape=jax.ShapeDtypeStruct((N, OUT), jnp.float32),
        in_specs=[pl.BlockSpec(memory_space=pltpu.MemorySpace.VMEM)] * 9,
        out_specs=pl.BlockSpec(memory_space=pltpu.MemorySpace.VMEM),
    )(s, *kparams)


def ref_forward(x, params):
    """Pure-JAX reference mirroring the PyTorch forward pass."""
    w1, b1, w2, b2, wl1, bl1, wl2, bl2 = params
    dn1 = lax.conv_dimension_numbers(x.shape, w1.shape, ('NCH', 'OIH', 'NCH'))
    c1 = lax.conv_general_dilated(x, w1, (1,), [(2, 2)], dimension_numbers=dn1)
    c1 = jnp.maximum(c1 + b1[None, :, None], 0.0)
    p1 = lax.reduce_window(c1, -jnp.inf, lax.max, (1, 1, 2), (1, 1, 2), 'VALID')
    dn2 = lax.conv_dimension_numbers(p1.shape, w2.shape, ('NCH', 'OIH', 'NCH'))
    c2 = lax.conv_general_dilated(p1, w2, (1,), [(3, 3)], dimension_numbers=dn2)
    c2 = jnp.maximum(c2 + b2[None, :, None], 0.0)
    p2 = lax.reduce_window(c2, -jnp.inf, lax.max, (1, 1, 2), (1, 1, 2), 'VALID')
    f = p2.reshape(p2.shape[0], -1)                             # channel-major flatten
    y1 = f @ wl1.T + bl1
    return y1 @ wl2.T + bl2


def make_params(key):
    """Deterministic PyTorch-default-style init (uniform +-1/sqrt(fan_in))."""
    ks = jax.random.split(key, 8)

    def u(k, shape, fan_in):
        b = 1.0 / np.sqrt(fan_in)
        return jax.random.uniform(k, shape, jnp.float32, -b, b)

    w1  = u(ks[0], (C1, 1, K1), 1 * K1)
    b1  = u(ks[1], (C1,), 1 * K1)
    w2  = u(ks[2], (C2, C1, K2), C1 * K2)
    b2  = u(ks[3], (C2,), C1 * K2)
    wl1 = u(ks[4], (H1, FEAT), FEAT)
    bl1 = u(ks[5], (H1,), FEAT)
    wl2 = u(ks[6], (OUT, H1), H1)
    bl2 = u(ks[7], (OUT,), H1)
    return (w1, b1, w2, b2, wl1, bl1, wl2, bl2)


if __name__ == "__main__":
    key = jax.random.PRNGKey(0)
    pkey, xkey = jax.random.split(key)
    params = make_params(pkey)
    kparams = prepare_params(params)      # one-time weight re-layout (outside hot path)
    x = jax.random.normal(xkey, (N, 1, LIN), jnp.float32)

    out = jax.block_until_ready(net_forward(x, kparams))
    ref = jax.block_until_ready(ref_forward(x, params))

    assert out.shape == (N, OUT), out.shape
    np.testing.assert_allclose(np.asarray(out), np.asarray(ref), rtol=2e-2, atol=2e-2)
    print("KERNEL_OK")
</pallas_src>

<mosaic_0001>
module attributes {stable_mosaic.version = 11 : i64} {
  func.func @net_kernel(%arg0: memref<7x2x1x81xf32, #tpu.memory_space<vmem>>, %arg1: memref<8x4xf32, #tpu.memory_space<vmem>>, %arg2: memref<8x1xf32, #tpu.memory_space<vmem>>, %arg3: memref<16x48xf32, #tpu.memory_space<vmem>>, %arg4: memref<16x1xf32, #tpu.memory_space<vmem>>, %arg5: memref<1296x81xf32, #tpu.memory_space<vmem>>, %arg6: memref<1x81xf32, #tpu.memory_space<vmem>>, %arg7: memref<81x5xf32, #tpu.memory_space<vmem>>, %arg8: memref<1x5xf32, #tpu.memory_space<vmem>>, %arg9: memref<2x5xf32, #tpu.memory_space<vmem>>) attributes {dimension_semantics = [], scalar_prefetch = 0 : i64, scratch_operands = 0 : i64, tpu.core_type = #tpu.core_type<tc>} {
    %c0 = arith.constant 0 : index
    %c0_0 = arith.constant 0 : index
    %c0_1 = arith.constant 0 : index
    %c0_2 = arith.constant 0 : index
    %0 = vector.load %arg0[%c0, %c0_0, %c0_1, %c0_2] : memref<7x2x1x81xf32, #tpu.memory_space<vmem>>, vector<7x2x1x81xf32>
    %c0_3 = arith.constant 0 : index
    %c0_4 = arith.constant 0 : index
    %1 = vector.load %arg1[%c0_3, %c0_4] : memref<8x4xf32, #tpu.memory_space<vmem>>, vector<8x4xf32>
    %2 = vector.extract_strided_slice %1 {offsets = [0, 0], sizes = [8, 1], strides = [1, 1]} : vector<8x4xf32> to vector<8x1xf32>
    %3 = vector.shape_cast %2 : vector<8x1xf32> to vector<1x8x1xf32>
    %4 = vector.extract_strided_slice %1 {offsets = [0, 1], sizes = [8, 1], strides = [1, 1]} : vector<8x4xf32> to vector<8x1xf32>
    %5 = vector.shape_cast %4 : vector<8x1xf32> to vector<1x8x1xf32>
    %6 = vector.extract_strided_slice %1 {offsets = [0, 2], sizes = [8, 1], strides = [1, 1]} : vector<8x4xf32> to vector<8x1xf32>
    %7 = vector.shape_cast %6 : vector<8x1xf32> to vector<1x8x1xf32>
    %8 = vector.extract_strided_slice %1 {offsets = [0, 3], sizes = [8, 1], strides = [1, 1]} : vector<8x4xf32> to vector<8x1xf32>
    %9 = vector.shape_cast %8 : vector<8x1xf32> to vector<1x8x1xf32>
    %10 = vector.extract_strided_slice %0 {offsets = [0, 0, 0, 0], sizes = [1, 2, 1, 81], strides = [1, 1, 1, 1]} : vector<7x2x1x81xf32> to vector<1x2x1x81xf32>
    %11 = vector.shape_cast %10 : vector<1x2x1x81xf32> to vector<2x1x81xf32>
    %12 = vector.extract_strided_slice %0 {offsets = [1, 0, 0, 0], sizes = [1, 2, 1, 81], strides = [1, 1, 1, 1]} : vector<7x2x1x81xf32> to vector<1x2x1x81xf32>
    %13 = vector.shape_cast %12 : vector<1x2x1x81xf32> to vector<2x1x81xf32>
    %14 = vector.extract_strided_slice %0 {offsets = [2, 0, 0, 0], sizes = [1, 2, 1, 81], strides = [1, 1, 1, 1]} : vector<7x2x1x81xf32> to vector<1x2x1x81xf32>
    %15 = vector.shape_cast %14 : vector<1x2x1x81xf32> to vector<2x1x81xf32>
    %16 = vector.extract_strided_slice %0 {offsets = [3, 0, 0, 0], sizes = [1, 2, 1, 81], strides = [1, 1, 1, 1]} : vector<7x2x1x81xf32> to vector<1x2x1x81xf32>
    %17 = vector.shape_cast %16 : vector<1x2x1x81xf32> to vector<2x1x81xf32>
    %18 = vector.extract_strided_slice %0 {offsets = [4, 0, 0, 0], sizes = [1, 2, 1, 81], strides = [1, 1, 1, 1]} : vector<7x2x1x81xf32> to vector<1x2x1x81xf32>
    %19 = vector.shape_cast %18 : vector<1x2x1x81xf32> to vector<2x1x81xf32>
    %20 = vector.extract_strided_slice %0 {offsets = [5, 0, 0, 0], sizes = [1, 2, 1, 81], strides = [1, 1, 1, 1]} : vector<7x2x1x81xf32> to vector<1x2x1x81xf32>
    %21 = vector.shape_cast %20 : vector<1x2x1x81xf32> to vector<2x1x81xf32>
    %22 = vector.extract_strided_slice %0 {offsets = [6, 0, 0, 0], sizes = [1, 2, 1, 81], strides = [1, 1, 1, 1]} : vector<7x2x1x81xf32> to vector<1x2x1x81xf32>
    %23 = vector.shape_cast %22 : vector<1x2x1x81xf32> to vector<2x1x81xf32>
    %c0_5 = arith.constant 0 : index
    %c0_6 = arith.constant 0 : index
    %24 = vector.load %arg2[%c0_5, %c0_6] : memref<8x1xf32, #tpu.memory_space<vmem>>, vector<8x1xf32>
    %25 = vector.shape_cast %24 : vector<8x1xf32> to vector<1x8x1xf32>
    %26 = vector.broadcast %3 : vector<1x8x1xf32> to vector<2x8x81xf32>
    %27 = vector.broadcast %11 : vector<2x1x81xf32> to vector<2x8x81xf32>
    %28 = arith.mulf %26, %27 : vector<2x8x81xf32>
    %29 = vector.broadcast %5 : vector<1x8x1xf32> to vector<2x8x81xf32>
    %30 = vector.broadcast %13 : vector<2x1x81xf32> to vector<2x8x81xf32>
    %31 = arith.mulf %29, %30 : vector<2x8x81xf32>
    %32 = arith.addf %28, %31 : vector<2x8x81xf32>
    %33 = vector.broadcast %7 : vector<1x8x1xf32> to vector<2x8x81xf32>
    %34 = vector.broadcast %15 : vector<2x1x81xf32> to vector<2x8x81xf32>
    %35 = arith.mulf %33, %34 : vector<2x8x81xf32>
    %36 = arith.addf %32, %35 : vector<2x8x81xf32>
    %37 = vector.broadcast %9 : vector<1x8x1xf32> to vector<2x8x81xf32>
    %38 = vector.broadcast %17 : vector<2x1x81xf32> to vector<2x8x81xf32>
    %39 = arith.mulf %37, %38 : vector<2x8x81xf32>
    %40 = arith.addf %36, %39 : vector<2x8x81xf32>
    %41 = vector.broadcast %3 : vector<1x8x1xf32> to vector<2x8x81xf32>
    %42 = vector.broadcast %13 : vector<2x1x81xf32> to vector<2x8x81xf32>
    %43 = arith.mulf %41, %42 : vector<2x8x81xf32>
    %44 = vector.broadcast %5 : vector<1x8x1xf32> to vector<2x8x81xf32>
    %45 = vector.broadcast %15 : vector<2x1x81xf32> to vector<2x8x81xf32>
    %46 = arith.mulf %44, %45 : vector<2x8x81xf32>
    %47 = arith.addf %43, %46 : vector<2x8x81xf32>
    %48 = vector.broadcast %7 : vector<1x8x1xf32> to vector<2x8x81xf32>
    %49 = vector.broadcast %17 : vector<2x1x81xf32> to vector<2x8x81xf32>
    %50 = arith.mulf %48, %49 : vector<2x8x81xf32>
    %51 = arith.addf %47, %50 : vector<2x8x81xf32>
    %52 = vector.broadcast %9 : vector<1x8x1xf32> to vector<2x8x81xf32>
    %53 = vector.broadcast %19 : vector<2x1x81xf32> to vector<2x8x81xf32>
    %54 = arith.mulf %52, %53 : vector<2x8x81xf32>
    %55 = arith.addf %51, %54 : vector<2x8x81xf32>
    %56 = arith.maximumf %40, %55 : vector<2x8x81xf32>
    %57 = vector.broadcast %25 : vector<1x8x1xf32> to vector<2x8x81xf32>
    %58 = arith.addf %56, %57 : vector<2x8x81xf32>
    %cst = arith.constant 0.000000e+00 : f32
    %59 = vector.broadcast %cst : f32 to vector<2x8x81xf32>
    %60 = arith.maximumf %58, %59 : vector<2x8x81xf32>
    %61 = vector.broadcast %3 : vector<1x8x1xf32> to vector<2x8x81xf32>
    %62 = vector.broadcast %15 : vector<2x1x81xf32> to vector<2x8x81xf32>
    %63 = arith.mulf %61, %62 : vector<2x8x81xf32>
    %64 = vector.broadcast %5 : vector<1x8x1xf32> to vector<2x8x81xf32>
    %65 = vector.broadcast %17 : vector<2x1x81xf32> to vector<2x8x81xf32>
    %66 = arith.mulf %64, %65 : vector<2x8x81xf32>
    %67 = arith.addf %63, %66 : vector<2x8x81xf32>
    %68 = vector.broadcast %7 : vector<1x8x1xf32> to vector<2x8x81xf32>
    %69 = vector.broadcast %19 : vector<2x1x81xf32> to vector<2x8x81xf32>
    %70 = arith.mulf %68, %69 : vector<2x8x81xf32>
    %71 = arith.addf %67, %70 : vector<2x8x81xf32>
    %72 = vector.broadcast %9 : vector<1x8x1xf32> to vector<2x8x81xf32>
    %73 = vector.broadcast %21 : vector<2x1x81xf32> to vector<2x8x81xf32>
    %74 = arith.mulf %72, %73 : vector<2x8x81xf32>
    %75 = arith.addf %71, %74 : vector<2x8x81xf32>
    %76 = vector.broadcast %3 : vector<1x8x1xf32> to vector<2x8x81xf32>
    %77 = vector.broadcast %17 : vector<2x1x81xf32> to vector<2x8x81xf32>
    %78 = arith.mulf %76, %77 : vector<2x8x81xf32>
    %79 = vector.broadcast %5 : vector<1x8x1xf32> to vector<2x8x81xf32>
    %80 = vector.broadcast %19 : vector<2x1x81xf32> to vector<2x8x81xf32>
    %81 = arith.mulf %79, %80 : vector<2x8x81xf32>
    %82 = arith.addf %78, %81 : vector<2x8x81xf32>
    %83 = vector.broadcast %7 : vector<1x8x1xf32> to vector<2x8x81xf32>
    %84 = vector.broadcast %21 : vector<2x1x81xf32> to vector<2x8x81xf32>
    %85 = arith.mulf %83, %84 : vector<2x8x81xf32>
    %86 = arith.addf %82, %85 : vector<2x8x81xf32>
    %87 = vector.broadcast %9 : vector<1x8x1xf32> to vector<2x8x81xf32>
    %88 = vector.broadcast %23 : vector<2x1x81xf32> to vector<2x8x81xf32>
    %89 = arith.mulf %87, %88 : vector<2x8x81xf32>
    %90 = arith.addf %86, %89 : vector<2x8x81xf32>
    %91 = arith.maximumf %75, %90 : vector<2x8x81xf32>
    %92 = vector.broadcast %25 : vector<1x8x1xf32> to vector<2x8x81xf32>
    %93 = arith.addf %91, %92 : vector<2x8x81xf32>
    %cst_7 = arith.constant 0.000000e+00 : f32
    %94 = vector.broadcast %cst_7 : f32 to vector<2x8x81xf32>
    %95 = arith.maximumf %93, %94 : vector<2x8x81xf32>
    %cst_8 = arith.constant 0.000000e+00 : f32
    %96 = vector.broadcast %cst_8 : f32 to vector<2x8x1xf32>
    %cst_9 = arith.constant 0.000000e+00 : f32
    %97 = vector.broadcast %cst_9 : f32 to vector<2x8x2xf32>
    %98 = tpu.concatenate %97, %95, %96 in 2 : vector<2x8x2xf32>, vector<2x8x81xf32>, vector<2x8x1xf32> -> vector<2x8x84xf32>
    %99 = tpu.concatenate %96, %60, %97 in 2 : vector<2x8x1xf32>, vector<2x8x81xf32>, vector<2x8x2xf32> -> vector<2x8x84xf32>
    %100 = vector.extract_strided_slice %98 {offsets = [0, 0, 0], sizes = [2, 8, 81], strides = [1, 1, 1]} : vector<2x8x84xf32> to vector<2x8x81xf32>
    %101 = vector.extract_strided_slice %99 {offsets = [0, 0, 0], sizes = [2, 8, 81], strides = [1, 1, 1]} : vector<2x8x84xf32> to vector<2x8x81xf32>
    %102 = vector.extract_strided_slice %98 {offsets = [0, 0, 1], sizes = [2, 8, 81], strides = [1, 1, 1]} : vector<2x8x84xf32> to vector<2x8x81xf32>
    %103 = vector.extract_strided_slice %99 {offsets = [0, 0, 1], sizes = [2, 8, 81], strides = [1, 1, 1]} : vector<2x8x84xf32> to vector<2x8x81xf32>
    %104 = vector.extract_strided_slice %98 {offsets = [0, 0, 2], sizes = [2, 8, 81], strides = [1, 1, 1]} : vector<2x8x84xf32> to vector<2x8x81xf32>
    %105 = vector.extract_strided_slice %99 {offsets = [0, 0, 2], sizes = [2, 8, 81], strides = [1, 1, 1]} : vector<2x8x84xf32> to vector<2x8x81xf32>
    %106 = vector.extract_strided_slice %98 {offsets = [0, 0, 3], sizes = [2, 8, 81], strides = [1, 1, 1]} : vector<2x8x84xf32> to vector<2x8x81xf32>
    %107 = vector.extract_strided_slice %100 {offsets = [0, 0, 0], sizes = [1, 8, 81], strides = [1, 1, 1]} : vector<2x8x81xf32> to vector<1x8x81xf32>
    %108 = vector.shape_cast %107 : vector<1x8x81xf32> to vector<8x81xf32>
    %109 = vector.extract_strided_slice %101 {offsets = [0, 0, 0], sizes = [1, 8, 81], strides = [1, 1, 1]} : vector<2x8x81xf32> to vector<1x8x81xf32>
    %110 = vector.shape_cast %109 : vector<1x8x81xf32> to vector<8x81xf32>
    %111 = vector.extract_strided_slice %102 {offsets = [0, 0, 0], sizes = [1, 8, 81], strides = [1, 1, 1]} : vector<2x8x81xf32> to vector<1x8x81xf32>
    %112 = vector.shape_cast %111 : vector<1x8x81xf32> to vector<8x81xf32>
    %113 = vector.extract_strided_slice %103 {offsets = [0, 0, 0], sizes = [1, 8, 81], strides = [1, 1, 1]} : vector<2x8x81xf32> to vector<1x8x81xf32>
    %114 = vector.shape_cast %113 : vector<1x8x81xf32> to vector<8x81xf32>
    %115 = vector.extract_strided_slice %104 {offsets = [0, 0, 0], sizes = [1, 8, 81], strides = [1, 1, 1]} : vector<2x8x81xf32> to vector<1x8x81xf32>
    %116 = vector.shape_cast %115 : vector<1x8x81xf32> to vector<8x81xf32>
    %117 = vector.extract_strided_slice %105 {offsets = [0, 0, 0], sizes = [1, 8, 81], strides = [1, 1, 1]} : vector<2x8x81xf32> to vector<1x8x81xf32>
    %118 = vector.shape_cast %117 : vector<1x8x81xf32> to vector<8x81xf32>
    %119 = tpu.concatenate %108, %110, %112, %114, %116, %118 in 0 : vector<8x81xf32>, vector<8x81xf32>, vector<8x81xf32>, vector<8x81xf32>, vector<8x81xf32>, vector<8x81xf32> -> vector<48x81xf32>
    %120 = vector.extract_strided_slice %101 {offsets = [0, 0, 0], sizes = [1, 8, 81], strides = [1, 1, 1]} : vector<2x8x81xf32> to vector<1x8x81xf32>
    %121 = vector.shape_cast %120 : vector<1x8x81xf32> to vector<8x81xf32>
    %122 = vector.extract_strided_slice %102 {offsets = [0, 0, 0], sizes = [1, 8, 81], strides = [1, 1, 1]} : vector<2x8x81xf32> to vector<1x8x81xf32>
    %123 = vector.shape_cast %122 : vector<1x8x81xf32> to vector<8x81xf32>
    %124 = vector.extract_strided_slice %103 {offsets = [0, 0, 0], sizes = [1, 8, 81], strides = [1, 1, 1]} : vector<2x8x81xf32> to vector<1x8x81xf32>
    %125 = vector.shape_cast %124 : vector<1x8x81xf32> to vector<8x81xf32>
    %126 = vector.extract_strided_slice %104 {offsets = [0, 0, 0], sizes = [1, 8, 81], strides = [1, 1, 1]} : vector<2x8x81xf32> to vector<1x8x81xf32>
    %127 = vector.shape_cast %126 : vector<1x8x81xf32> to vector<8x81xf32>
    %128 = vector.extract_strided_slice %105 {offsets = [0, 0, 0], sizes = [1, 8, 81], strides = [1, 1, 1]} : vector<2x8x81xf32> to vector<1x8x81xf32>
    %129 = vector.shape_cast %128 : vector<1x8x81xf32> to vector<8x81xf32>
    %130 = vector.extract_strided_slice %106 {offsets = [0, 0, 0], sizes = [1, 8, 81], strides = [1, 1, 1]} : vector<2x8x81xf32> to vector<1x8x81xf32>
    %131 = vector.shape_cast %130 : vector<1x8x81xf32> to vector<8x81xf32>
    %132 = tpu.concatenate %121, %123, %125, %127, %129, %131 in 0 : vector<8x81xf32>, vector<8x81xf32>, vector<8x81xf32>, vector<8x81xf32>, vector<8x81xf32>, vector<8x81xf32> -> vector<48x81xf32>
    %133 = vector.extract_strided_slice %100 {offsets = [1, 0, 0], sizes = [1, 8, 81], strides = [1, 1, 1]} : vector<2x8x81xf32> to vector<1x8x81xf32>
    %134 = vector.shape_cast %133 : vector<1x8x81xf32> to vector<8x81xf32>
    %135 = vector.extract_strided_slice %101 {offsets = [1, 0, 0], sizes = [1, 8, 81], strides = [1, 1, 1]} : vector<2x8x81xf32> to vector<1x8x81xf32>
    %136 = vector.shape_cast %135 : vector<1x8x81xf32> to vector<8x81xf32>
    %137 = vector.extract_strided_slice %102 {offsets = [1, 0, 0], sizes = [1, 8, 81], strides = [1, 1, 1]} : vector<2x8x81xf32> to vector<1x8x81xf32>
    %138 = vector.shape_cast %137 : vector<1x8x81xf32> to vector<8x81xf32>
    %139 = vector.extract_strided_slice %103 {offsets = [1, 0, 0], sizes = [1, 8, 81], strides = [1, 1, 1]} : vector<2x8x81xf32> to vector<1x8x81xf32>
    %140 = vector.shape_cast %139 : vector<1x8x81xf32> to vector<8x81xf32>
    %141 = vector.extract_strided_slice %104 {offsets = [1, 0, 0], sizes = [1, 8, 81], strides = [1, 1, 1]} : vector<2x8x81xf32> to vector<1x8x81xf32>
    %142 = vector.shape_cast %141 : vector<1x8x81xf32> to vector<8x81xf32>
    %143 = vector.extract_strided_slice %105 {offsets = [1, 0, 0], sizes = [1, 8, 81], strides = [1, 1, 1]} : vector<2x8x81xf32> to vector<1x8x81xf32>
    %144 = vector.shape_cast %143 : vector<1x8x81xf32> to vector<8x81xf32>
    %145 = tpu.concatenate %134, %136, %138, %140, %142, %144 in 0 : vector<8x81xf32>, vector<8x81xf32>, vector<8x81xf32>, vector<8x81xf32>, vector<8x81xf32>, vector<8x81xf32> -> vector<48x81xf32>
    %146 = vector.extract_strided_slice %101 {offsets = [1, 0, 0], sizes = [1, 8, 81], strides = [1, 1, 1]} : vector<2x8x81xf32> to vector<1x8x81xf32>
    %147 = vector.shape_cast %146 : vector<1x8x81xf32> to vector<8x81xf32>
    %148 = vector.extract_strided_slice %102 {offsets = [1, 0, 0], sizes = [1, 8, 81], strides = [1, 1, 1]} : vector<2x8x81xf32> to vector<1x8x81xf32>
    %149 = vector.shape_cast %148 : vector<1x8x81xf32> to vector<8x81xf32>
    %150 = vector.extract_strided_slice %103 {offsets = [1, 0, 0], sizes = [1, 8, 81], strides = [1, 1, 1]} : vector<2x8x81xf32> to vector<1x8x81xf32>
    %151 = vector.shape_cast %150 : vector<1x8x81xf32> to vector<8x81xf32>
    %152 = vector.extract_strided_slice %104 {offsets = [1, 0, 0], sizes = [1, 8, 81], strides = [1, 1, 1]} : vector<2x8x81xf32> to vector<1x8x81xf32>
    %153 = vector.shape_cast %152 : vector<1x8x81xf32> to vector<8x81xf32>
    %154 = vector.extract_strided_slice %105 {offsets = [1, 0, 0], sizes = [1, 8, 81], strides = [1, 1, 1]} : vector<2x8x81xf32> to vector<1x8x81xf32>
    %155 = vector.shape_cast %154 : vector<1x8x81xf32> to vector<8x81xf32>
    %156 = vector.extract_strided_slice %106 {offsets = [1, 0, 0], sizes = [1, 8, 81], strides = [1, 1, 1]} : vector<2x8x81xf32> to vector<1x8x81xf32>
    %157 = vector.shape_cast %156 : vector<1x8x81xf32> to vector<8x81xf32>
    %158 = tpu.concatenate %147, %149, %151, %153, %155, %157 in 0 : vector<8x81xf32>, vector<8x81xf32>, vector<8x81xf32>, vector<8x81xf32>, vector<8x81xf32>, vector<8x81xf32> -> vector<48x81xf32>
    %159 = tpu.concatenate %119, %132, %145, %158 in 1 : vector<48x81xf32>, vector<48x81xf32>, vector<48x81xf32>, vector<48x81xf32> -> vector<48x324xf32>
    %c0_10 = arith.constant 0 : index
    %c0_11 = arith.constant 0 : index
    %160 = vector.load %arg3[%c0_10, %c0_11] : memref<16x48xf32, #tpu.memory_space<vmem>>, vector<16x48xf32>
    %cst_12 = arith.constant dense<0.000000e+00> : vector<16x324xf32>
    %161 = tpu.matmul %160, %159, %cst_12 {dimension_numbers = #tpu.dot_dimension_numbers<[1], [0], [0], [1], [0, 0, 1, 1], [], []>} : vector<16x48xf32>, vector<48x324xf32>, vector<16x324xf32> -> vector<16x324xf32>
    %c0_13 = arith.constant 0 : index
    %c0_14 = arith.constant 0 : index
    %162 = vector.load %arg4[%c0_13, %c0_14] : memref<16x1xf32, #tpu.memory_space<vmem>>, vector<16x1xf32>
    %163 = vector.extract_strided_slice %161 {offsets = [0, 0], sizes = [16, 81], strides = [1, 1]} : vector<16x324xf32> to vector<16x81xf32>
    %164 = vector.extract_strided_slice %161 {offsets = [0, 81], sizes = [16, 81], strides = [1, 1]} : vector<16x324xf32> to vector<16x81xf32>
    %165 = arith.maximumf %163, %164 : vector<16x81xf32>
    %166 = vector.broadcast %162 : vector<16x1xf32> to vector<16x81xf32>
    %167 = arith.addf %165, %166 : vector<16x81xf32>
    %cst_15 = arith.constant 0.000000e+00 : f32
    %168 = vector.broadcast %cst_15 : f32 to vector<16x81xf32>
    %169 = arith.maximumf %167, %168 : vector<16x81xf32>
    %170 = vector.extract_strided_slice %169 {offsets = [0, 0], sizes = [1, 81], strides = [1, 1]} : vector<16x81xf32> to vector<1x81xf32>
    %171 = vector.extract_strided_slice %169 {offsets = [1, 0], sizes = [1, 81], strides = [1, 1]} : vector<16x81xf32> to vector<1x81xf32>
    %172 = vector.extract_strided_slice %169 {offsets = [2, 0], sizes = [1, 81], strides = [1, 1]} : vector<16x81xf32> to vector<1x81xf32>
    %173 = vector.extract_strided_slice %169 {offsets = [3, 0], sizes = [1, 81], strides = [1, 1]} : vector<16x81xf32> to vector<1x81xf32>
    %174 = vector.extract_strided_slice %169 {offsets = [4, 0], sizes = [1, 81], strides = [1, 1]} : vector<16x81xf32> to vector<1x81xf32>
    %175 = vector.extract_strided_slice %169 {offsets = [5, 0], sizes = [1, 81], strides = [1, 1]} : vector<16x81xf32> to vector<1x81xf32>
    %176 = vector.extract_strided_slice %169 {offsets = [6, 0], sizes = [1, 81], strides = [1, 1]} : vector<16x81xf32> to vector<1x81xf32>
    %177 = vector.extract_strided_slice %169 {offsets = [7, 0], sizes = [1, 81], strides = [1, 1]} : vector<16x81xf32> to vector<1x81xf32>
    %178 = vector.extract_strided_slice %169 {offsets = [8, 0], sizes = [1, 81], strides = [1, 1]} : vector<16x81xf32> to vector<1x81xf32>
    %179 = vector.extract_strided_slice %169 {offsets = [9, 0], sizes = [1, 81], strides = [1, 1]} : vector<16x81xf32> to vector<1x81xf32>
    %180 = vector.extract_strided_slice %169 {offsets = [10, 0], sizes = [1, 81], strides = [1, 1]} : vector<16x81xf32> to vector<1x81xf32>
    %181 = vector.extract_strided_slice %169 {offsets = [11, 0], sizes = [1, 81], strides = [1, 1]} : vector<16x81xf32> to vector<1x81xf32>
    %182 = vector.extract_strided_slice %169 {offsets = [12, 0], sizes = [1, 81], strides = [1, 1]} : vector<16x81xf32> to vector<1x81xf32>
    %183 = vector.extract_strided_slice %169 {offsets = [13, 0], sizes = [1, 81], strides = [1, 1]} : vector<16x81xf32> to vector<1x81xf32>
    %184 = vector.extract_strided_slice %169 {offsets = [14, 0], sizes = [1, 81], strides = [1, 1]} : vector<16x81xf32> to vector<1x81xf32>
    %185 = vector.extract_strided_slice %169 {offsets = [15, 0], sizes = [1, 81], strides = [1, 1]} : vector<16x81xf32> to vector<1x81xf32>
    %186 = tpu.concatenate %170, %171, %172, %173, %174, %175, %176, %177, %178, %179, %180, %181, %182, %183, %184, %185 in 1 : vector<1x81xf32>, vector<1x81xf32>, vector<1x81xf32>, vector<1x81xf32>, vector<1x81xf32>, vector<1x81xf32>, vector<1x81xf32>, vector<1x81xf32>, vector<1x81xf32>, vector<1x81xf32>, vector<1x81xf32>, vector<1x81xf32>, vector<1x81xf32>, vector<1x81xf32>, vector<1x81xf32>, vector<1x81xf32> -> vector<1x1296xf32>
    %187 = vector.extract_strided_slice %161 {offsets = [0, 162], sizes = [16, 81], strides = [1, 1]} : vector<16x324xf32> to vector<16x81xf32>
    %188 = vector.extract_strided_slice %161 {offsets = [0, 243], sizes = [16, 81], strides = [1, 1]} : vector<16x324xf32> to vector<16x81xf32>
    %189 = arith.maximumf %187, %188 : vector<16x81xf32>
    %190 = vector.broadcast %162 : vector<16x1xf32> to vector<16x81xf32>
    %191 = arith.addf %189, %190 : vector<16x81xf32>
    %cst_16 = arith.constant 0.000000e+00 : f32
    %192 = vector.broadcast %cst_16 : f32 to vector<16x81xf32>
    %193 = arith.maximumf %191, %192 : vector<16x81xf32>
    %194 = vector.extract_strided_slice %193 {offsets = [0, 0], sizes = [1, 81], strides = [1, 1]} : vector<16x81xf32> to vector<1x81xf32>
    %195 = vector.extract_strided_slice %193 {offsets = [1, 0], sizes = [1, 81], strides = [1, 1]} : vector<16x81xf32> to vector<1x81xf32>
    %196 = vector.extract_strided_slice %193 {offsets = [2, 0], sizes = [1, 81], strides = [1, 1]} : vector<16x81xf32> to vector<1x81xf32>
    %197 = vector.extract_strided_slice %193 {offsets = [3, 0], sizes = [1, 81], strides = [1, 1]} : vector<16x81xf32> to vector<1x81xf32>
    %198 = vector.extract_strided_slice %193 {offsets = [4, 0], sizes = [1, 81], strides = [1, 1]} : vector<16x81xf32> to vector<1x81xf32>
    %199 = vector.extract_strided_slice %193 {offsets = [5, 0], sizes = [1, 81], strides = [1, 1]} : vector<16x81xf32> to vector<1x81xf32>
    %200 = vector.extract_strided_slice %193 {offsets = [6, 0], sizes = [1, 81], strides = [1, 1]} : vector<16x81xf32> to vector<1x81xf32>
    %201 = vector.extract_strided_slice %193 {offsets = [7, 0], sizes = [1, 81], strides = [1, 1]} : vector<16x81xf32> to vector<1x81xf32>
    %202 = vector.extract_strided_slice %193 {offsets = [8, 0], sizes = [1, 81], strides = [1, 1]} : vector<16x81xf32> to vector<1x81xf32>
    %203 = vector.extract_strided_slice %193 {offsets = [9, 0], sizes = [1, 81], strides = [1, 1]} : vector<16x81xf32> to vector<1x81xf32>
    %204 = vector.extract_strided_slice %193 {offsets = [10, 0], sizes = [1, 81], strides = [1, 1]} : vector<16x81xf32> to vector<1x81xf32>
    %205 = vector.extract_strided_slice %193 {offsets = [11, 0], sizes = [1, 81], strides = [1, 1]} : vector<16x81xf32> to vector<1x81xf32>
    %206 = vector.extract_strided_slice %193 {offsets = [12, 0], sizes = [1, 81], strides = [1, 1]} : vector<16x81xf32> to vector<1x81xf32>
    %207 = vector.extract_strided_slice %193 {offsets = [13, 0], sizes = [1, 81], strides = [1, 1]} : vector<16x81xf32> to vector<1x81xf32>
    %208 = vector.extract_strided_slice %193 {offsets = [14, 0], sizes = [1, 81], strides = [1, 1]} : vector<16x81xf32> to vector<1x81xf32>
    %209 = vector.extract_strided_slice %193 {offsets = [15, 0], sizes = [1, 81], strides = [1, 1]} : vector<16x81xf32> to vector<1x81xf32>
    %210 = tpu.concatenate %194, %195, %196, %197, %198, %199, %200, %201, %202, %203, %204, %205, %206, %207, %208, %209 in 1 : vector<1x81xf32>, vector<1x81xf32>, vector<1x81xf32>, vector<1x81xf32>, vector<1x81xf32>, vector<1x81xf32>, vector<1x81xf32>, vector<1x81xf32>, vector<1x81xf32>, vector<1x81xf32>, vector<1x81xf32>, vector<1x81xf32>, vector<1x81xf32>, vector<1x81xf32>, vector<1x81xf32>, vector<1x81xf32> -> vector<1x1296xf32>
    %211 = tpu.concatenate %186, %210 in 0 : vector<1x1296xf32>, vector<1x1296xf32> -> vector<2x1296xf32>
    %c0_17 = arith.constant 0 : index
    %c0_18 = arith.constant 0 : index
    %212 = vector.load %arg5[%c0_17, %c0_18] : memref<1296x81xf32, #tpu.memory_space<vmem>>, vector<1296x81xf32>
    %cst_19 = arith.constant dense<0.000000e+00> : vector<2x81xf32>
    %213 = tpu.matmul %211, %212, %cst_19 {dimension_numbers = #tpu.dot_dimension_numbers<[1], [0], [0], [1], [0, 0, 1, 1], [], []>} : vector<2x1296xf32>, vector<1296x81xf32>, vector<2x81xf32> -> vector<2x81xf32>
    %c0_20 = arith.constant 0 : index
    %c0_21 = arith.constant 0 : index
    %214 = vector.load %arg6[%c0_20, %c0_21] : memref<1x81xf32, #tpu.memory_space<vmem>>, vector<1x81xf32>
    %215 = vector.broadcast %214 : vector<1x81xf32> to vector<2x81xf32>
    %216 = arith.addf %213, %215 : vector<2x81xf32>
    %c0_22 = arith.constant 0 : index
    %c0_23 = arith.constant 0 : index
    %217 = vector.load %arg7[%c0_22, %c0_23] : memref<81x5xf32, #tpu.memory_space<vmem>>, vector<81x5xf32>
    %cst_24 = arith.constant dense<0.000000e+00> : vector<2x5xf32>
    %218 = tpu.matmul %216, %217, %cst_24 {dimension_numbers = #tpu.dot_dimension_numbers<[1], [0], [0], [1], [0, 0, 1, 1], [], []>} : vector<2x81xf32>, vector<81x5xf32>, vector<2x5xf32> -> vector<2x5xf32>
    %c0_25 = arith.constant 0 : index
    %c0_26 = arith.constant 0 : index
    %219 = vector.load %arg8[%c0_25, %c0_26] : memref<1x5xf32, #tpu.memory_space<vmem>>, vector<1x5xf32>
    %220 = vector.broadcast %219 : vector<1x5xf32> to vector<2x5xf32>
    %221 = arith.addf %218, %220 : vector<2x5xf32>
    %c0_27 = arith.constant 0 : index
    %c0_28 = arith.constant 0 : index
    %222 = vector.load %arg9[%c0_27, %c0_28] : memref<2x5xf32, #tpu.memory_space<vmem>>, vector<2x5xf32>
    tpu.vector_store %arg9[%c0_27, %c0_28], %221 {strides = array<i32>} : memref<2x5xf32, #tpu.memory_space<vmem>>, vector<2x5xf32>,
    return
  }
}

</mosaic_0001>

<llo_original>
// kernel: net_forward.1
$region0: #{net_forward.1}
  #allocation0 [shape = 'u32[]', space=smem, size = 0x4, offset = 0x4, fixed_abs, tag = 'smem constant byte address 0x4 - core index']
  #allocation1 [shape = 'u32[144,128]{1,0:T(1,128)}', space=vmem, size = 0x12000, scoped, tag = 'internal scratch']
  %s0 = inlined_call_operand.vmem [shape: f32[7,2,1,81], index: 0, kind: input, shape index: {}]
  %s1 = inlined_call_operand.vmem [shape: f32[8,4], index: 1, kind: input, shape index: {}]
  %s2 = inlined_call_operand.vmem [shape: f32[8,1], index: 2, kind: input, shape index: {}]
  %s3 = inlined_call_operand.vmem [shape: f32[16,48], index: 3, kind: input, shape index: {}]
  %s4 = inlined_call_operand.vmem [shape: f32[16,1], index: 4, kind: input, shape index: {}]
  %s5 = inlined_call_operand.vmem [shape: f32[1296,81], index: 5, kind: input, shape index: {}]
  %s6 = inlined_call_operand.vmem [shape: f32[1,81], index: 6, kind: input, shape index: {}]
  %s7 = inlined_call_operand.vmem [shape: f32[81,5], index: 7, kind: input, shape index: {}]
  %s8 = inlined_call_operand.vmem [shape: f32[1,5], index: 8, kind: input, shape index: {}]
  %s9 = inlined_call_operand.hbm [shape: f32[2,5], index: 9, kind: output, shape index: {}]
  %s10 = sld [smem:[#allocation0]]
  $region46: #{net_forward.1} parent=0
    _
  %s12 = ssub.s32 1, %s10
  %s13 = scalar_select 0, %s12, %s10
  $region1: #{net_forward.1} parent=0
    #allocation2 [shape = 'u8[1024]{0}', space=vmem, size = 0x400, scoped, tag = 'output window, operand 0, single buffered']
    #allocation3 [shape = 's32[1]{0}', space=sflag, size = 0x4, scoped, tag = 'scoped memory for net_forward.1']
    %14 = vsyncpa [#allocation3], 0
    // Predicated region
    $region2: #{net_forward.1} parent=1 // pred_check
      _
    $region3: #{net_forward.1} parent=1 // pred_check_branch
      %16 = sbr.rel (0) target = $region5
    $region4: #{net_forward.1} parent=1 // pred_region
      _
    $region5: #{net_forward.1} parent=1 // pred_fallthru
      _
    // Predicated region
    $region6: #{net_forward.1} parent=1 // pred_check
      _
    $region7: #{net_forward.1} parent=1 // pred_check_branch
      %18 = sbr.rel (0) target = $region9
    $region8: #{net_forward.1} parent=1 // pred_region
      _
    $region9: #{net_forward.1} parent=1 // pred_fallthru
      _
    // Predicated region
    $region10: #{net_forward.1} parent=1 // pred_check
      _
    $region11: #{net_forward.1} parent=1 // pred_check_branch
      %20 = sbr.rel (0) target = $region13
    $region12: #{net_forward.1} parent=1 // pred_region
      _
    $region13: #{net_forward.1} parent=1 // pred_fallthru
      _
    // Predicated region
    $region14: #{net_forward.1} parent=1 // pred_check
      _
    $region15: #{net_forward.1} parent=1 // pred_check_branch
      %22 = sbr.rel (0) target = $region17
    $region16: #{net_forward.1} parent=1 // pred_region
      _
    $region17: #{net_forward.1} parent=1 // pred_fallthru
      _
    // Predicated region
    $region18: #{net_forward.1} parent=1 // pred_check
      _
    $region19: #{net_forward.1} parent=1 // pred_check_branch
      %24 = sbr.rel (0) target = $region21
    $region20: #{net_forward.1} parent=1 // pred_region
      _
    $region21: #{net_forward.1} parent=1 // pred_fallthru
      _
    // Predicated region
    $region22: #{net_forward.1} parent=1 // pred_check
      _
    $region23: #{net_forward.1} parent=1 // pred_check_branch
      %26 = sbr.rel (0) target = $region25
    $region24: #{net_forward.1} parent=1 // pred_region
      _
    $region25: #{net_forward.1} parent=1 // pred_fallthru
      _
    // Predicated region
    $region26: #{net_forward.1} parent=1 // pred_check
      _
    $region27: #{net_forward.1} parent=1 // pred_check_branch
      %28 = sbr.rel (0) target = $region29
    $region28: #{net_forward.1} parent=1 // pred_region
      _
    $region29: #{net_forward.1} parent=1 // pred_fallthru
      _
    // Predicated region
    $region30: #{net_forward.1} parent=1 // pred_check
      _
    $region31: #{net_forward.1} parent=1 // pred_check_branch
      %30 = sbr.rel (0) target = $region33
    $region32: #{net_forward.1} parent=1 // pred_region
      _
    $region33: #{net_forward.1} parent=1 // pred_fallthru
      _
    // Predicated region
    $region34: #{net_forward.1} parent=1 // pred_check
      _
    $region35: #{net_forward.1} parent=1 // pred_check_branch
      %32 = sbr.rel (0) target = $region37
    $region36: #{net_forward.1} parent=1 // pred_region
      _
    $region37: #{net_forward.1} parent=1 // pred_fallthru
      _
    %v33 = vld [vmem:[%s0] sm:$0x1]
    %v34 = vld [vmem:[%s0 + $0x1] sm:$0x1]
    %v35 = vld [vmem:[%s0 + $0x2] sm:$0x1]
    %v36 = vld [vmem:[%s0 + $0x3] sm:$0x1]
    %v37 = vld [vmem:[%s0 + $0x4] sm:$0x1]
    %v38 = vld [vmem:[%s0 + $0x5] sm:$0x1]
    %v39 = vld [vmem:[%s0 + $0x6] sm:$0x1]
    %v40 = vld [vmem:[%s0 + $0x7] sm:$0x1]
    %v41 = vld [vmem:[%s0 + $0x8] sm:$0x1]
    %v42 = vld [vmem:[%s0 + $0x9] sm:$0x1]
    %v43 = vld [vmem:[%s0 + $0xa] sm:$0x1]
    %v44 = vld [vmem:[%s0 + $0xb] sm:$0x1]
    %v45 = vld [vmem:[%s0 + $0xc] sm:$0x1]
    %v46 = vld [vmem:[%s0 + $0xd] sm:$0x1]
    %v47 = vld [vmem:[%s1] sm:$0xff]
    %v48 = vld [vmem:[%s2] sm:$0xff]
    %50 = vset.pattern.permute.xlu0 0
    %51 = vperm.xlu0 %50, %v47
    %v52 = vpop.permute.xlu0 %51
    %v56 = vlaneseq
    %v57 = vshrl.u32 %v56, 7
    %v58 = vsub.s32 0, %v57
    %v59 = vrot.slane %v33, %v58
    %v60 = vlaneseq
    %v61 = vshrl.u32 %v60, 7
    %v62 = vsub.s32 0, %v61
    %v63 = vrot.slane %v34, %v62
    %v66 = vmul.f32 %v52, %v59
    %v67 = vmul.f32 %v52, %v63
    %68 = vset.pattern.permute.xlu0 1
    %69 = vperm.xlu0 %68, %v47
    %v70 = vpop.permute.xlu0 %69
    %v74 = vlaneseq
    %v75 = vshrl.u32 %v74, 7
    %v76 = vsub.s32 0, %v75
    %v77 = vrot.slane %v35, %v76
    %v78 = vlaneseq
    %v79 = vshrl.u32 %v78, 7
    %v80 = vsub.s32 0, %v79
    %v81 = vrot.slane %v36, %v80
    %v84 = vmul.f32 %v70, %v77
    %v85 = vmul.f32 %v70, %v81
    %v86 = vadd.f32 %v66, %v84
    %v87 = vadd.f32 %v67, %v85
    %88 = vset.pattern.permute.xlu0 2
    %89 = vperm.xlu0 %88, %v47
    %v90 = vpop.permute.xlu0 %89
    %v94 = vlaneseq
    %v95 = vshrl.u32 %v94, 7
    %v96 = vsub.s32 0, %v95
    %v97 = vrot.slane %v37, %v96
    %v98 = vlaneseq
    %v99 = vshrl.u32 %v98, 7
    %v100 = vsub.s32 0, %v99
    %v101 = vrot.slane %v38, %v100
    %v104 = vmul.f32 %v90, %v97
    %v105 = vmul.f32 %v90, %v101
    %v106 = vadd.f32 %v86, %v104
    %v107 = vadd.f32 %v87, %v105
    %108 = vset.pattern.permute.xlu0 3
    %109 = vperm.xlu0 %108, %v47
    %v110 = vpop.permute.xlu0 %109
    %v114 = vlaneseq
    %v115 = vshrl.u32 %v114, 7
    %v116 = vsub.s32 0, %v115
    %v117 = vrot.slane %v39, %v116
    %v118 = vlaneseq
    %v119 = vshrl.u32 %v118, 7
    %v120 = vsub.s32 0, %v119
    %v121 = vrot.slane %v40, %v120
    %v124 = vmul.f32 %v110, %v117
    %v125 = vmul.f32 %v110, %v121
    %v126 = vadd.f32 %v106, %v124
    %v127 = vadd.f32 %v107, %v125
    %v128 = vmul.f32 %v52, %v77
    %v129 = vmul.f32 %v52, %v81
    %v130 = vmul.f32 %v70, %v97
    %v131 = vmul.f32 %v70, %v101
    %v132 = vadd.f32 %v128, %v130
    %v133 = vadd.f32 %v129, %v131
    %v134 = vmul.f32 %v90, %v117
    %v135 = vmul.f32 %v90, %v121
    %v136 = vadd.f32 %v132, %v134
    %v137 = vadd.f32 %v133, %v135
    %v140 = vlaneseq
    %v141 = vshrl.u32 %v140, 7
    %v142 = vsub.s32 0, %v141
    %v143 = vrot.slane %v41, %v142
    %v144 = vlaneseq
    %v145 = vshrl.u32 %v144, 7
    %v146 = vsub.s32 0, %v145
    %v147 = vrot.slane %v42, %v146
    %v150 = vmul.f32 %v110, %v143
    %v151 = vmul.f32 %v110, %v147
    %v152 = vadd.f32 %v136, %v150
    %v153 = vadd.f32 %v137, %v151
    %v154 = vmax.f32 %v126, %v152
    %v155 = vmax.f32 %v127, %v153
    %157 = vset.pattern.permute.xlu0 0
    %158 = vperm.xlu0 %157, %v48
    %v159 = vpop.permute.xlu0 %158
    %v161 = vadd.f32 %v154, %v159
    %v162 = vadd.f32 %v155, %v159
    %v163 = vmax.f32 %v161, 0.0
    %v164 = vmax.f32 %v162, 0.0
    %v165 = vmul.f32 %v52, %v97
    %v166 = vmul.f32 %v52, %v101
    %v167 = vmul.f32 %v70, %v117
    %v168 = vmul.f32 %v70, %v121
    %v169 = vadd.f32 %v165, %v167
    %v170 = vadd.f32 %v166, %v168
    %v171 = vmul.f32 %v90, %v143
    %v172 = vmul.f32 %v90, %v147
    %v173 = vadd.f32 %v169, %v171
    %v174 = vadd.f32 %v170, %v172
    %v177 = vlaneseq
    %v178 = vshrl.u32 %v177, 7
    %v179 = vsub.s32 0, %v178
    %v180 = vrot.slane %v43, %v179
    %v181 = vlaneseq
    %v182 = vshrl.u32 %v181, 7
    %v183 = vsub.s32 0, %v182
    %v184 = vrot.slane %v44, %v183
    %v187 = vmul.f32 %v110, %v180
    %v188 = vmul.f32 %v110, %v184
    %v189 = vadd.f32 %v173, %v187
    %v190 = vadd.f32 %v174, %v188
    %v191 = vmul.f32 %v52, %v117
    %v192 = vmul.f32 %v52, %v121
    %v193 = vmul.f32 %v70, %v143
    %v194 = vmul.f32 %v70, %v147
    %v195 = vadd.f32 %v191, %v193
    %v196 = vadd.f32 %v192, %v194
    %v197 = vmul.f32 %v90, %v180
    %v198 = vmul.f32 %v90, %v184
    %v199 = vadd.f32 %v195, %v197
    %v200 = vadd.f32 %v196, %v198
    %v203 = vlaneseq
    %v204 = vshrl.u32 %v203, 7
    %v205 = vsub.s32 0, %v204
    %v206 = vrot.slane %v45, %v205
    %v207 = vlaneseq
    %v208 = vshrl.u32 %v207, 7
    %v209 = vsub.s32 0, %v208
    %v210 = vrot.slane %v46, %v209
    %v213 = vmul.f32 %v110, %v206
    %v214 = vmul.f32 %v110, %v210
    %v215 = vadd.f32 %v199, %v213
    %v216 = vadd.f32 %v200, %v214
    %v217 = vmax.f32 %v189, %v215
    %v218 = vmax.f32 %v190, %v216
    %v219 = vadd.f32 %v217, %v159
    %v220 = vadd.f32 %v218, %v159
    %v221 = vmax.f32 %v219, 0.0
    %v222 = vmax.f32 %v220, 0.0
    %225 = vrot.lane.b32.xlu0 %v221, 2
    %v226 = vpop.permute.xlu0 %225
    %227 = vrot.lane.b32.xlu0 %v222, 2
    %v228 = vpop.permute.xlu0 %227
    %vm231 = vcmask 15360
    %v232 = vsel %vm231, 0.0, %v226
    %v233 = vsel %vm231, 0.0, %v228
    %vm234 = vcmask 678912
    %v235 = vsel %vm234, %v232, 0.0
    %v236 = vsel %vm234, %v233, 0.0
    %239 = vrot.lane.b32.xlu0 %v163, 1
    %v240 = vpop.permute.xlu0 %239
    %241 = vrot.lane.b32.xlu0 %v164, 1
    %v242 = vpop.permute.xlu0 %241
    %vm245 = vcmask 7168
    %v246 = vsel %vm245, 0.0, %v240
    %v247 = vsel %vm245, 0.0, %v242
    %vm248 = vcmask 670720
    %v249 = vsel %vm248, %v246, 0.0
    %v250 = vsel %vm248, %v247, 0.0
    %252 = vrot.lane.b32.xlu0 %v235, 127
    %v253 = vpop.permute.xlu0 %252
    %256 = vrot.lane.b32.xlu0 %v249, 127
    %v257 = vpop.permute.xlu0 %256
    %259 = vrot.lane.b32.xlu0 %v235, 126
    %v260 = vpop.permute.xlu0 %259
    %262 = vrot.lane.b32.xlu0 %v249, 126
    %v263 = vpop.permute.xlu0 %262
    %265 = vrot.lane.b32.xlu0 %v235, 125
    %v266 = vpop.permute.xlu0 %265
    %268 = vrot.lane.b32.xlu0 %v236, 127
    %v269 = vpop.permute.xlu0 %268
    %271 = vrot.lane.b32.xlu0 %v250, 127
    %v272 = vpop.permute.xlu0 %271
    %273 = vrot.lane.b32.xlu0 %v236, 126
    %v274 = vpop.permute.xlu0 %273
    %275 = vrot.lane.b32.xlu0 %v250, 126
    %v276 = vpop.permute.xlu0 %275
    %277 = vrot.lane.b32.xlu0 %v236, 125
    %v278 = vpop.permute.xlu0 %277
    %279 = vrot.lane.b32.xlu0 %v249, 81
    %v280 = vpop.permute.xlu0 %279
    %281 = vrot.lane.b32.xlu0 %v253, 81
    %v282 = vpop.permute.xlu0 %281
    %283 = vrot.lane.b32.xlu0 %v257, 81
    %v284 = vpop.permute.xlu0 %283
    %285 = vrot.lane.b32.xlu0 %v260, 81
    %v286 = vpop.permute.xlu0 %285
    %287 = vrot.lane.b32.xlu0 %v263, 81
    %v288 = vpop.permute.xlu0 %287
    %289 = vrot.lane.b32.xlu0 %v266, 81
    %v290 = vpop.permute.xlu0 %289
    %297 = vrot.lane.b32.xlu0 %v236, 34
    %v298 = vpop.permute.xlu0 %297
    %299 = vrot.lane.b32.xlu0 %v250, 34
    %v300 = vpop.permute.xlu0 %299
    %301 = vrot.lane.b32.xlu0 %v269, 34
    %v302 = vpop.permute.xlu0 %301
    %303 = vrot.lane.b32.xlu0 %v272, 34
    %v304 = vpop.permute.xlu0 %303
    %305 = vrot.lane.b32.xlu0 %v274, 34
    %v306 = vpop.permute.xlu0 %305
    %307 = vrot.lane.b32.xlu0 %v276, 34
    %v308 = vpop.permute.xlu0 %307
    %315 = vrot.lane.b32.xlu0 %v250, 115
    %v316 = vpop.permute.xlu0 %315
    %317 = vrot.lane.b32.xlu0 %v269, 115
    %v318 = vpop.permute.xlu0 %317
    %319 = vrot.lane.b32.xlu0 %v272, 115
    %v320 = vpop.permute.xlu0 %319
    %321 = vrot.lane.b32.xlu0 %v274, 115
    %v322 = vpop.permute.xlu0 %321
    %323 = vrot.lane.b32.xlu0 %v276, 115
    %v324 = vpop.permute.xlu0 %323
    %325 = vrot.lane.b32.xlu0 %v278, 115
    %v326 = vpop.permute.xlu0 %325
    %vm333 = vcmask 662528
    %v334 = vsel %vm333, %v235, %v280
    %v335 = vsel %vm333, %v249, %v282
    %v336 = vsel %vm333, %v253, %v284
    %v337 = vsel %vm333, %v257, %v286
    %v338 = vsel %vm333, %v260, %v288
    %v339 = vsel %vm333, %v263, %v290
    %vm340 = vcmask 277504
    %v341 = vsel %vm340, %v280, %v298
    %v342 = vsel %vm340, %v282, %v300
    %v343 = vsel %vm340, %v284, %v302
    %v344 = vsel %vm340, %v286, %v304
    %v345 = vsel %vm340, %v288, %v306
    %v346 = vsel %vm340, %v290, %v308
    %vm347 = vcmask 941056
    %v348 = vsel %vm347, %v341, %v316
    %v349 = vsel %vm347, %v342, %v318
    %v350 = vsel %vm347, %v343, %v320
    %v351 = vsel %vm347, %v344, %v322
    %v352 = vsel %vm347, %v345, %v324
    %v353 = vsel %vm347, %v346, %v326
    %v354 = vld [vmem:[%s3] sm:$0xff]
    %v355 = vld [vmem:[%s3 + $0x8] sm:$0xff]
    %vm356 = vcmask 392192
    %v358 = vsel %vm356, %v354, 0
    %v361 = vsel %vm356, %v355, 0
    %363 = vmatprep.subr.mxu0 0.0
    %364 = vmatpush1.msra.mxu0 0.0
    %365 = vmatprep.subr.mxu0 0.0
    %366 = vmatpush1.msra.mxu0 0.0
    %367 = vmatprep.subr.mxu0 0.0
    %368 = vmatpush1.msra.mxu0 0.0
    %369 = vmatprep.subr.mxu0 0.0
    %370 = vmatpush1.msra.mxu0 0.0
    %371 = vmatprep.subr.mxu0 0.0
    %372 = vmatpush1.msra.mxu0 0.0
    %373 = vmatprep.subr.mxu0 0.0
    %374 = vmatpush1.msra.mxu0 0.0
    %375 = vmatprep.subr.mxu0 0.0
    %376 = vmatpush1.msra.mxu0 0.0
    %377 = vmatprep.subr.mxu0 0.0
    %378 = vmatpush1.msra.mxu0 0.0
    %379 = vmatprep.subr.mxu0 0.0
    %380 = vmatpush1.msra.mxu0 0.0
    %381 = vmatprep.subr.mxu0 0.0
    %382 = vmatpush1.msra.mxu0 0.0
    %383 = vmatprep.subr.mxu0 %v353
    %384 = vmatpush1.msra.mxu0 %v339
    %385 = vmatprep.subr.mxu0 %v352
    %386 = vmatpush1.msra.mxu0 %v338
    %387 = vmatprep.subr.mxu0 %v351
    %388 = vmatpush1.msra.mxu0 %v337
    %389 = vmatprep.subr.mxu0 %v350
    %390 = vmatpush1.msra.mxu0 %v336
    %391 = vmatprep.subr.mxu0 %v349
    %392 = vmatpush1.msra.mxu0 %v335
    %393 = vmatprep.subr.mxu0 %v348
    %394 = vmatpush1.msra.mxu0 %v334
    %395 = vmatprep.subr.mxu0 0.0
    %396 = vmatpush2.msra.mxu0 0.0
    %397 = vmatprep.subr.mxu0 0.0
    %398 = vmatpush2.msra.mxu0 0.0
    %399 = vmatprep.subr.mxu0 0.0
    %400 = vmatpush2.msra.mxu0 0.0
    %401 = vmatprep.subr.mxu0 0.0
    %402 = vmatpush2.msra.mxu0 0.0
    %403 = vmatprep.subr.mxu0 0.0
    %404 = vmatpush2.msra.mxu0 0.0
    %405 = vmatprep.subr.mxu0 0.0
    %406 = vmatpush2.msra.mxu0 0.0
    %407 = vmatprep.subr.mxu0 0.0
    %408 = vmatpush2.msra.mxu0 0.0
    %409 = vmatprep.subr.mxu0 0.0
    %410 = vmatpush2.msra.mxu0 0.0
    %411 = vmatprep.subr.mxu0 0.0
    %412 = vmatpush2.msra.mxu0 0.0
    %413 = vmatprep.subr.mxu0 0.0
    %414 = vmatpush2.msra.mxu0 0.0
    %415 = vmatprep.subr.mxu0 0.0
    %416 = vmatpush2.msra.mxu0 0.0
    %417 = vmatprep.subr.mxu0 0.0
    %418 = vmatpush2.msra.mxu0 0.0
    %419 = vmatprep.subr.mxu0 0.0
    %420 = vmatpush2.msra.mxu0 0.0
    %421 = vmatprep.subr.mxu0 0.0
    %422 = vmatpush2.msra.mxu0 0.0
    %423 = vmatprep.subr.mxu0 0.0
    %424 = vmatpush2.msra.mxu0 0.0
    %425 = vmatprep.subr.mxu0 0.0
    %426 = vmatpush2.msra.mxu0 0.0
    %427 = vmatprep.mubr.f32.mxu0 0.0
    %428 = vmatmul.mubr.f32.gmra.mxu0 %v358
    %v429 = vpop.f32.mrf.mxu0
    %v430 = vadd.f32 0.0, %v429
    %v431 = vpop.f32.mrf.mxu0
    %v432 = vadd.f32 0.0, %v431
    %433 = vmatprep.mubr.f32.mxu0 0.0
    %434 = vmatmul.mubr.f32.gmra.mxu0 %v361
    %v435 = vpop.f32.mrf.mxu0
    %v436 = vadd.f32 0.0, %v435
    %v437 = vpop.f32.mrf.mxu0
    %v438 = vadd.f32 0.0, %v437
    %439 = vdwg.mxu0
    %440 = vmatprep.subr.mxu0 0.0
    %441 = vmatpush1.msra.mxu0 0.0
    %442 = vmatprep.subr.mxu0 0.0
    %443 = vmatpush1.msra.mxu0 0.0
    %444 = vmatprep.subr.mxu0 0.0
    %445 = vmatpush1.msra.mxu0 0.0
    %446 = vmatprep.subr.mxu0 0.0
    %447 = vmatpush1.msra.mxu0 0.0
    %448 = vmatprep.subr.mxu0 0.0
    %449 = vmatpush1.msra.mxu0 0.0
    %450 = vmatprep.subr.mxu0 0.0
    %451 = vmatpush1.msra.mxu0 0.0
    %452 = vmatprep.subr.mxu0 0.0
    %453 = vmatpush1.msra.mxu0 0.0
    %454 = vmatprep.subr.mxu0 0.0
    %455 = vmatpush1.msra.mxu0 0.0
    %456 = vmatprep.subr.mxu0 0.0
    %457 = vmatpush1.msra.mxu0 0.0
    %458 = vmatprep.subr.mxu0 0.0
    %459 = vmatpush1.msra.mxu0 0.0
    %460 = vmatprep.subr.mxu0 0.0
    %461 = vmatpush1.msra.mxu0 %v326
    %462 = vmatprep.subr.mxu0 0.0
    %463 = vmatpush1.msra.mxu0 %v324
    %464 = vmatprep.subr.mxu0 0.0
    %465 = vmatpush1.msra.mxu0 %v322
    %466 = vmatprep.subr.mxu0 0.0
    %467 = vmatpush1.msra.mxu0 %v320
    %468 = vmatprep.subr.mxu0 0.0
    %469 = vmatpush1.msra.mxu0 %v318
    %470 = vmatprep.subr.mxu0 0.0
    %471 = vmatpush1.msra.mxu0 %v316
    %472 = vmatprep.subr.mxu0 0.0
    %473 = vmatpush2.msra.mxu0 0.0
    %474 = vmatprep.subr.mxu0 0.0
    %475 = vmatpush2.msra.mxu0 0.0
    %476 = vmatprep.subr.mxu0 0.0
    %477 = vmatpush2.msra.mxu0 0.0
    %478 = vmatprep.subr.mxu0 0.0
    %479 = vmatpush2.msra.mxu0 0.0
    %480 = vmatprep.subr.mxu0 0.0
    %481 = vmatpush2.msra.mxu0 0.0
    %482 = vmatprep.subr.mxu0 0.0
    %483 = vmatpush2.msra.mxu0 0.0
    %484 = vmatprep.subr.mxu0 0.0
    %485 = vmatpush2.msra.mxu0 0.0
    %486 = vmatprep.subr.mxu0 0.0
    %487 = vmatpush2.msra.mxu0 0.0
    %488 = vmatprep.subr.mxu0 0.0
    %489 = vmatpush2.msra.mxu0 0.0
    %490 = vmatprep.subr.mxu0 0.0
    %491 = vmatpush2.msra.mxu0 0.0
    %492 = vmatprep.subr.mxu0 0.0
    %493 = vmatpush2.msra.mxu0 0.0
    %494 = vmatprep.subr.mxu0 0.0
    %495 = vmatpush2.msra.mxu0 0.0
    %496 = vmatprep.subr.mxu0 0.0
    %497 = vmatpush2.msra.mxu0 0.0
    %498 = vmatprep.subr.mxu0 0.0
    %499 = vmatpush2.msra.mxu0 0.0
    %500 = vmatprep.subr.mxu0 0.0
    %501 = vmatpush2.msra.mxu0 0.0
    %502 = vmatprep.subr.mxu0 0.0
    %503 = vmatpush2.msra.mxu0 0.0
    %504 = vmatprep.mubr.f32.mxu0 0.0
    %505 = vmatmul.mubr.f32.gmra.mxu0 %v358
    %v506 = vpop.f32.mrf.mxu0
    %v507 = vadd.f32 0.0, %v506
    %v508 = vpop.f32.mrf.mxu0
    %509 = vmatprep.mubr.f32.mxu0 0.0
    %510 = vmatmul.mubr.f32.gmra.mxu0 %v361
    %v511 = vpop.f32.mrf.mxu0
    %v512 = vadd.f32 0.0, %v511
    %v513 = vpop.f32.mrf.mxu0
    %514 = vdwg.mxu0
    %v515 = vld [vmem:[%s4] sm:$0xff]
    %v516 = vld [vmem:[%s4 + $0x8] sm:$0xff]
    %521 = vrot.lane.b32.xlu0 %v430, 47
    %v522 = vpop.permute.xlu0 %521
    %523 = vrot.lane.b32.xlu0 %v432, 47
    %v524 = vpop.permute.xlu0 %523
    %525 = vrot.lane.b32.xlu0 %v436, 47
    %v526 = vpop.permute.xlu0 %525
    %527 = vrot.lane.b32.xlu0 %v438, 47
    %v528 = vpop.permute.xlu0 %527
    %vm529 = vcmask 384000
    %v530 = vsel %vm529, %v522, %v524
    %v531 = vsel %vm529, %v526, %v528
    %v534 = vmax.f32 %v430, %v530
    %v535 = vmax.f32 %v436, %v531
    %537 = vset.pattern.permute.xlu0 0
    %538 = vperm.xlu0 %537, %v515
    %v539 = vpop.permute.xlu0 %538
    %542 = vset.pattern.permute.xlu0 0
    %543 = vperm.xlu0 %542, %v516
    %v544 = vpop.permute.xlu0 %543
    %v546 = vadd.f32 %v534, %v539
    %v547 = vadd.f32 %v535, %v544
    %v548 = vmax.f32 %v546, 0.0
    %v549 = vmax.f32 %v547, 0.0
    %v551 = vrot.slane %v548, 1
    %552 = vrot.lane.b32.xlu0 %v551, 81
    %v553 = vpop.permute.xlu0 %552
    %v555 = vrot.slane %v548, 2
    %556 = vrot.lane.b32.xlu0 %v555, 34
    %v557 = vpop.permute.xlu0 %556
    %v559 = vrot.slane %v548, 3
    %560 = vrot.lane.b32.xlu0 %v559, 115
    %v561 = vpop.permute.xlu0 %560
    %v563 = vrot.slane %v548, 4
    %564 = vrot.lane.b32.xlu0 %v563, 68
    %v565 = vpop.permute.xlu0 %564
    %v567 = vrot.slane %v548, 5
    %568 = vrot.lane.b32.xlu0 %v567, 21
    %v569 = vpop.permute.xlu0 %568
    %v571 = vrot.slane %v548, 6
    %572 = vrot.lane.b32.xlu0 %v571, 102
    %v573 = vpop.permute.xlu0 %572
    %v575 = vrot.slane %v548, 7
    %576 = vrot.lane.b32.xlu0 %v575, 55
    %v577 = vpop.permute.xlu0 %576
    %580 = vrot.lane.b32.xlu0 %v549, 8
    %v581 = vpop.permute.xlu0 %580
    %v583 = vrot.slane %v549, 1
    %584 = vrot.lane.b32.xlu0 %v583, 89
    %v585 = vpop.permute.xlu0 %584
    %v587 = vrot.slane %v549, 2
    %588 = vrot.lane.b32.xlu0 %v587, 42
    %v589 = vpop.permute.xlu0 %588
    %v591 = vrot.slane %v549, 3
    %592 = vrot.lane.b32.xlu0 %v591, 123
    %v593 = vpop.permute.xlu0 %592
    %v595 = vrot.slane %v549, 4
    %596 = vrot.lane.b32.xlu0 %v595, 76
    %v597 = vpop.permute.xlu0 %596
    %v599 = vrot.slane %v549, 5
    %600 = vrot.lane.b32.xlu0 %v599, 29
    %v601 = vpop.permute.xlu0 %600
    %v603 = vrot.slane %v549, 6
    %604 = vrot.lane.b32.xlu0 %v603, 110
    %v605 = vpop.permute.xlu0 %604
    %v607 = vrot.slane %v549, 7
    %608 = vrot.lane.b32.xlu0 %v607, 63
    %v609 = vpop.permute.xlu0 %608
    %v611 = vsel %vm333, %v548, %v553
    %v612 = vsel %vm340, %v553, %v557
    %v613 = vsel %vm347, %v612, %v561
    %vm614 = vcmask 556032
    %v615 = vsel %vm614, %v561, %v565
    %vm616 = vcmask 171008
    %v617 = vsel %vm616, %v565, %v569
    %vm618 = vcmask 834560
    %v619 = vsel %vm618, %v617, %v573
    %vm620 = vcmask 449536
    %v621 = vsel %vm620, %v573, %v577
    %vm622 = vcmask 64512
    %v623 = vsel %vm622, %v577, %v581
    %vm624 = vcmask 728064
    %v625 = vsel %vm624, %v623, %v585
    %vm626 = vcmask 343040
    %v627 = vsel %vm626, %v585, %v589
    %vm628 = vcmask 1006592
    %v629 = vsel %vm628, %v627, %v593
    %vm630 = vcmask 621568
    %v631 = vsel %vm630, %v593, %v597
    %vm632 = vcmask 236544
    %v633 = vsel %vm632, %v597, %v601
    %vm634 = vcmask 900096
    %v635 = vsel %vm634, %v633, %v605
    %vm636 = vcmask 515072
    %v637 = vsel %vm636, %v605, %v609
    %640 = vrot.lane.b32.xlu0 %v507, 47
    %v641 = vpop.permute.xlu0 %640
    %642 = vrot.lane.b32.xlu0 %v512, 47
    %v643 = vpop.permute.xlu0 %642
    %v644 = vsel %vm529, %v524, %v641
    %v645 = vsel %vm529, %v528, %v643
    %v648 = vmax.f32 %v432, %v644
    %v649 = vmax.f32 %v438, %v645
    %v650 = vadd.f32 %v648, %v539
    %v651 = vadd.f32 %v649, %v544
    %v652 = vmax.f32 %v650, 0.0
    %v653 = vmax.f32 %v651, 0.0
    %655 = vrot.lane.b32.xlu0 %v652, 94
    %v656 = vpop.permute.xlu0 %655
    %v658 = vrot.slane %v652, 1
    %659 = vrot.lane.b32.xlu0 %v658, 47
    %v660 = vpop.permute.xlu0 %659
    %v662 = vrot.slane %v652, 2
    %v664 = vrot.slane %v652, 3
    %665 = vrot.lane.b32.xlu0 %v664, 81
    %v666 = vpop.permute.xlu0 %665
    %v668 = vrot.slane %v652, 4
    %669 = vrot.lane.b32.xlu0 %v668, 34
    %v670 = vpop.permute.xlu0 %669
    %v672 = vrot.slane %v652, 5
    %673 = vrot.lane.b32.xlu0 %v672, 115
    %v674 = vpop.permute.xlu0 %673
    %v676 = vrot.slane %v652, 6
    %677 = vrot.lane.b32.xlu0 %v676, 68
    %v678 = vpop.permute.xlu0 %677
    %v680 = vrot.slane %v652, 7
    %681 = vrot.lane.b32.xlu0 %v680, 21
    %v682 = vpop.permute.xlu0 %681
    %685 = vrot.lane.b32.xlu0 %v653, 102
    %v686 = vpop.permute.xlu0 %685
    %v688 = vrot.slane %v653, 1
    %689 = vrot.lane.b32.xlu0 %v688, 55
    %v690 = vpop.permute.xlu0 %689
    %v692 = vrot.slane %v653, 2
    %693 = vrot.lane.b32.xlu0 %v692, 8
    %v694 = vpop.permute.xlu0 %693
    %v696 = vrot.slane %v653, 3
    %697 = vrot.lane.b32.xlu0 %v696, 89
    %v698 = vpop.permute.xlu0 %697
    %v700 = vrot.slane %v653, 4
    %701 = vrot.lane.b32.xlu0 %v700, 42
    %v702 = vpop.permute.xlu0 %701
    %v704 = vrot.slane %v653, 5
    %705 = vrot.lane.b32.xlu0 %v704, 123
    %v706 = vpop.permute.xlu0 %705
    %v708 = vrot.slane %v653, 6
    %709 = vrot.lane.b32.xlu0 %v708, 76
    %v710 = vpop.permute.xlu0 %709
    %v712 = vrot.slane %v653, 7
    %713 = vrot.lane.b32.xlu0 %v712, 29
    %v714 = vpop.permute.xlu0 %713
    %v716 = vsel %vm333, %v656, %v660
    %v717 = vsel %vm340, %v660, %v662
    %v718 = vsel %vm347, %v717, %v666
    %v719 = vsel %vm614, %v666, %v670
    %v720 = vsel %vm616, %v670, %v674
    %v721 = vsel %vm618, %v720, %v678
    %v722 = vsel %vm620, %v678, %v682
    %v723 = vsel %vm622, %v682, %v686
    %v724 = vsel %vm624, %v723, %v690
    %v725 = vsel %vm626, %v690, %v694
    %v726 = vsel %vm628, %v725, %v698
    %v727 = vsel %vm630, %v698, %v702
    %v728 = vsel %vm632, %v702, %v706
    %v729 = vsel %vm634, %v728, %v710
    %v730 = vsel %vm636, %v710, %v714
    %v741 = vrot.slane %v716, 7
    %v742 = vrot.slane %v718, 7
    %v743 = vrot.slane %v719, 7
    %v744 = vrot.slane %v721, 7
    %v745 = vrot.slane %v722, 7
    %v746 = vrot.slane %v724, 7
    %v747 = vrot.slane %v726, 7
    %v748 = vrot.slane %v727, 7
    %v749 = vrot.slane %v729, 7
    %v750 = vrot.slane %v730, 7
    %v751 = vrot.slane %v714, 7
    %vm763 = vcmask 1040384
    %v764 = vsel %vm763, %v611, %v741
    %v765 = vsel %vm763, %v613, %v742
    %v766 = vsel %vm763, %v615, %v743
    %v767 = vsel %vm763, %v619, %v744
    %v768 = vsel %vm763, %v621, %v745
    %v769 = vsel %vm763, %v625, %v746
    %v770 = vsel %vm763, %v629, %v747
    %v771 = vsel %vm763, %v631, %v748
    %v772 = vsel %vm763, %v635, %v749
    %v773 = vsel %vm763, %v637, %v750
    %v774 = vsel %vm763, %v609, %v751
    %v775 = vld [vmem:[%s5] sm:$0xff]
    %v776 = vld [vmem:[%s5 + $0x8] sm:$0xff]
    %v777 = vld [vmem:[%s5 + $0x10] sm:$0xff]
    %v778 = vld [vmem:[%s5 + $0x18] sm:$0xff]
    %v779 = vld [vmem:[%s5 + $0x20] sm:$0xff]
    %v780 = vld [vmem:[%s5 + $0x28] sm:$0xff]
    %v781 = vld [vmem:[%s5 + $0x30] sm:$0xff]
    %v782 = vld [vmem:[%s5 + $0x38] sm:$0xff]
    %v783 = vld [vmem:[%s5 + $0x40] sm:$0xff]
    %v784 = vld [vmem:[%s5 + $0x48] sm:$0xff]
    %v785 = vld [vmem:[%s5 + $0x50] sm:$0xff]
    %v786 = vld [vmem:[%s5 + $0x58] sm:$0xff]
    %v787 = vld [vmem:[%s5 + $0x60] sm:$0xff]
    %v788 = vld [vmem:[%s5 + $0x68] sm:$0xff]
    %v789 = vld [vmem:[%s5 + $0x70] sm:$0xff]
    %v790 = vld [vmem:[%s5 + $0x78] sm:$0xff]
    %v791 = vld [vmem:[%s5 + $0x80] sm:$0xff]
    %v792 = vld [vmem:[%s5 + $0x88] sm:$0xff]
    %v793 = vld [vmem:[%s5 + $0x90] sm:$0xff]
    %v794 = vld [vmem:[%s5 + $0x98] sm:$0xff]
    %v795 = vld [vmem:[%s5 + $0xa0] sm:$0xff]
    %v796 = vld [vmem:[%s5 + $0xa8] sm:$0xff]
    %v797 = vld [vmem:[%s5 + $0xb0] sm:$0xff]
    %v798 = vld [vmem:[%s5 + $0xb8] sm:$0xff]
    %v799 = vld [vmem:[%s5 + $0xc0] sm:$0xff]
    %v800 = vld [vmem:[%s5 + $0xc8] sm:$0xff]
    %v801 = vld [vmem:[%s5 + $0xd0] sm:$0xff]
    %v802 = vld [vmem:[%s5 + $0xd8] sm:$0xff]
    %v803 = vld [vmem:[%s5 + $0xe0] sm:$0xff]
    %v804 = vld [vmem:[%s5 + $0xe8] sm:$0xff]
    %v805 = vld [vmem:[%s5 + $0xf0] sm:$0xff]
    %v806 = vld [vmem:[%s5 + $0xf8] sm:$0xff]
    %v807 = vld [vmem:[%s5 + $0x100] sm:$0xff]
    %v808 = vld [vmem:[%s5 + $0x108] sm:$0xff]
    %v809 = vld [vmem:[%s5 + $0x110] sm:$0xff]
    %v810 = vld [vmem:[%s5 + $0x118] sm:$0xff]
    %v811 = vld [vmem:[%s5 + $0x120] sm:$0xff]
    %v812 = vld [vmem:[%s5 + $0x128] sm:$0xff]
    %v813 = vld [vmem:[%s5 + $0x130] sm:$0xff]
    %v814 = vld [vmem:[%s5 + $0x138] sm:$0xff]
    %v815 = vld [vmem:[%s5 + $0x140] sm:$0xff]
    %v816 = vld [vmem:[%s5 + $0x148] sm:$0xff]
    %v817 = vld [vmem:[%s5 + $0x150] sm:$0xff]
    %v818 = vld [vmem:[%s5 + $0x158] sm:$0xff]
    %v819 = vld [vmem:[%s5 + $0x160] sm:$0xff]
    %v820 = vld [vmem:[%s5 + $0x168] sm:$0xff]
    %v821 = vld [vmem:[%s5 + $0x170] sm:$0xff]
    %v822 = vld [vmem:[%s5 + $0x178] sm:$0xff]
    %v823 = vld [vmem:[%s5 + $0x180] sm:$0xff]
    %v824 = vld [vmem:[%s5 + $0x188] sm:$0xff]
    %v825 = vld [vmem:[%s5 + $0x190] sm:$0xff]
    %v826 = vld [vmem:[%s5 + $0x198] sm:$0xff]
    %v827 = vld [vmem:[%s5 + $0x1a0] sm:$0xff]
    %v828 = vld [vmem:[%s5 + $0x1a8] sm:$0xff]
    %v829 = vld [vmem:[%s5 + $0x1b0] sm:$0xff]
    %v830 = vld [vmem:[%s5 + $0x1b8] sm:$0xff]
    %v831 = vld [vmem:[%s5 + $0x1c0] sm:$0xff]
    %v832 = vld [vmem:[%s5 + $0x1c8] sm:$0xff]
    %v833 = vld [vmem:[%s5 + $0x1d0] sm:$0xff]
    %v834 = vld [vmem:[%s5 + $0x1d8] sm:$0xff]
    %v835 = vld [vmem:[%s5 + $0x1e0] sm:$0xff]
    %v836 = vld [vmem:[%s5 + $0x1e8] sm:$0xff]
    %v837 = vld [vmem:[%s5 + $0x1f0] sm:$0xff]
    %v838 = vld [vmem:[%s5 + $0x1f8] sm:$0xff]
    %v839 = vld [vmem:[%s5 + $0x200] sm:$0xff]
    %v840 = vld [vmem:[%s5 + $0x208] sm:$0xff]
    %v841 = vld [vmem:[%s5 + $0x210] sm:$0xff]
    %v842 = vld [vmem:[%s5 + $0x218] sm:$0xff]
    %v843 = vld [vmem:[%s5 + $0x220] sm:$0xff]
    %v844 = vld [vmem:[%s5 + $0x228] sm:$0xff]
    %v845 = vld [vmem:[%s5 + $0x230] sm:$0xff]
    %v846 = vld [vmem:[%s5 + $0x238] sm:$0xff]
    %v847 = vld [vmem:[%s5 + $0x240] sm:$0xff]
    %v848 = vld [vmem:[%s5 + $0x248] sm:$0xff]
    %v849 = vld [vmem:[%s5 + $0x250] sm:$0xff]
    %v850 = vld [vmem:[%s5 + $0x258] sm:$0xff]
    %v851 = vld [vmem:[%s5 + $0x260] sm:$0xff]
    %v852 = vld [vmem:[%s5 + $0x268] sm:$0xff]
    %v853 = vld [vmem:[%s5 + $0x270] sm:$0xff]
    %v854 = vld [vmem:[%s5 + $0x278] sm:$0xff]
    %v855 = vld [vmem:[%s5 + $0x280] sm:$0xff]
    %v856 = vld [vmem:[%s5 + $0x288] sm:$0xff]
    %v857 = vld [vmem:[%s5 + $0x290] sm:$0xff]
    %v858 = vld [vmem:[%s5 + $0x298] sm:$0xff]
    %v859 = vld [vmem:[%s5 + $0x2a0] sm:$0xff]
    %v860 = vld [vmem:[%s5 + $0x2a8] sm:$0xff]
    %v861 = vld [vmem:[%s5 + $0x2b0] sm:$0xff]
    %v862 = vld [vmem:[%s5 + $0x2b8] sm:$0xff]
    %v863 = vld [vmem:[%s5 + $0x2c0] sm:$0xff]
    %v864 = vld [vmem:[%s5 + $0x2c8] sm:$0xff]
    %v865 = vld [vmem:[%s5 + $0x2d0] sm:$0xff]
    %v866 = vld [vmem:[%s5 + $0x2d8] sm:$0xff]
    %v867 = vld [vmem:[%s5 + $0x2e0] sm:$0xff]
    %v868 = vld [vmem:[%s5 + $0x2e8] sm:$0xff]
    %v869 = vld [vmem:[%s5 + $0x2f0] sm:$0xff]
    %v870 = vld [vmem:[%s5 + $0x2f8] sm:$0xff]
    %v871 = vld [vmem:[%s5 + $0x300] sm:$0xff]
    %v872 = vld [vmem:[%s5 + $0x308] sm:$0xff]
    %v873 = vld [vmem:[%s5 + $0x310] sm:$0xff]
    %v874 = vld [vmem:[%s5 + $0x318] sm:$0xff]
    %v875 = vld [vmem:[%s5 + $0x320] sm:$0xff]
    %v876 = vld [vmem:[%s5 + $0x328] sm:$0xff]
    %v877 = vld [vmem:[%s5 + $0x330] sm:$0xff]
    %v878 = vld [vmem:[%s5 + $0x338] sm:$0xff]
    %v879 = vld [vmem:[%s5 + $0x340] sm:$0xff]
    %v880 = vld [vmem:[%s5 + $0x348] sm:$0xff]
    %v881 = vld [vmem:[%s5 + $0x350] sm:$0xff]
    %v882 = vld [vmem:[%s5 + $0x358] sm:$0xff]
    %v883 = vld [vmem:[%s5 + $0x360] sm:$0xff]
    %v884 = vld [vmem:[%s5 + $0x368] sm:$0xff]
    %v885 = vld [vmem:[%s5 + $0x370] sm:$0xff]
    %v886 = vld [vmem:[%s5 + $0x378] sm:$0xff]
    %v887 = vld [vmem:[%s5 + $0x380] sm:$0xff]
    %v888 = vld [vmem:[%s5 + $0x388] sm:$0xff]
    %v889 = vld [vmem:[%s5 + $0x390] sm:$0xff]
    %v890 = vld [vmem:[%s5 + $0x398] sm:$0xff]
    %v891 = vld [vmem:[%s5 + $0x3a0] sm:$0xff]
    %v892 = vld [vmem:[%s5 + $0x3a8] sm:$0xff]
    %v893 = vld [vmem:[%s5 + $0x3b0] sm:$0xff]
    %v894 = vld [vmem:[%s5 + $0x3b8] sm:$0xff]
    %v895 = vld [vmem:[%s5 + $0x3c0] sm:$0xff]
    %v896 = vld [vmem:[%s5 + $0x3c8] sm:$0xff]
    %v897 = vld [vmem:[%s5 + $0x3d0] sm:$0xff]
    %v898 = vld [vmem:[%s5 + $0x3d8] sm:$0xff]
    %v899 = vld [vmem:[%s5 + $0x3e0] sm:$0xff]
    %v900 = vld [vmem:[%s5 + $0x3e8] sm:$0xff]
    %v901 = vld [vmem:[%s5 + $0x3f0] sm:$0xff]
    %v902 = vld [vmem:[%s5 + $0x3f8] sm:$0xff]
    %v903 = vld [vmem:[%s5 + $0x400] sm:$0xff]
    %v904 = vld [vmem:[%s5 + $0x408] sm:$0xff]
    %v905 = vld [vmem:[%s5 + $0x410] sm:$0xff]
    %v906 = vld [vmem:[%s5 + $0x418] sm:$0xff]
    %v907 = vld [vmem:[%s5 + $0x420] sm:$0xff]
    %v908 = vld [vmem:[%s5 + $0x428] sm:$0xff]
    %v909 = vld [vmem:[%s5 + $0x430] sm:$0xff]
    %v910 = vld [vmem:[%s5 + $0x438] sm:$0xff]
    %v911 = vld [vmem:[%s5 + $0x440] sm:$0xff]
    %v912 = vld [vmem:[%s5 + $0x448] sm:$0xff]
    %v913 = vld [vmem:[%s5 + $0x450] sm:$0xff]
    %v914 = vld [vmem:[%s5 + $0x458] sm:$0xff]
    %v915 = vld [vmem:[%s5 + $0x460] sm:$0xff]
    %v916 = vld [vmem:[%s5 + $0x468] sm:$0xff]
    %v917 = vld [vmem:[%s5 + $0x470] sm:$0xff]
    %v918 = vld [vmem:[%s5 + $0x478] sm:$0xff]
    %v919 = vld [vmem:[%s5 + $0x480] sm:$0xff]
    %v920 = vld [vmem:[%s5 + $0x488] sm:$0xff]
    %v921 = vld [vmem:[%s5 + $0x490] sm:$0xff]
    %v922 = vld [vmem:[%s5 + $0x498] sm:$0xff]
    %v923 = vld [vmem:[%s5 + $0x4a0] sm:$0xff]
    %v924 = vld [vmem:[%s5 + $0x4a8] sm:$0xff]
    %v925 = vld [vmem:[%s5 + $0x4b0] sm:$0xff]
    %v926 = vld [vmem:[%s5 + $0x4b8] sm:$0xff]
    %v927 = vld [vmem:[%s5 + $0x4c0] sm:$0xff]
    %v928 = vld [vmem:[%s5 + $0x4c8] sm:$0xff]
    %v929 = vld [vmem:[%s5 + $0x4d0] sm:$0xff]
    %v930 = vld [vmem:[%s5 + $0x4d8] sm:$0xff]
    %v931 = vld [vmem:[%s5 + $0x4e0] sm:$0xff]
    %v932 = vld [vmem:[%s5 + $0x4e8] sm:$0xff]
    %v933 = vld [vmem:[%s5 + $0x4f0] sm:$0xff]
    %v934 = vld [vmem:[%s5 + $0x4f8] sm:$0xff]
    %v935 = vld [vmem:[%s5 + $0x500] sm:$0xff]
    %v936 = vld [vmem:[%s5 + $0x508] sm:$0xff]
    %v937 = vld [vmem:[%s6] sm:$0x1]
    %v939 = vlaneseq
    %v940 = vshrl.u32 %v939, 7
    %v941 = vsub.s32 0, %v940
    %v942 = vrot.slane %v937, %v941
    %vm944 = vcmask 130048
    %v946 = vsel %vm944, %v774, 0
    %948 = vmatprep.subr.mxu0 0.0
    %949 = vmatpush1.msra.mxu0 %v790
    %950 = vmatprep.subr.mxu0 0.0
    %951 = vmatpush1.msra.mxu0 %v789
    %952 = vmatprep.subr.mxu0 0.0
    %953 = vmatpush1.msra.mxu0 %v788
    %954 = vmatprep.subr.mxu0 0.0
    %955 = vmatpush1.msra.mxu0 %v787
    %956 = vmatprep.subr.mxu0 0.0
    %957 = vmatpush1.msra.mxu0 %v786
    %958 = vmatprep.subr.mxu0 0.0
    %959 = vmatpush1.msra.mxu0 %v785
    %960 = vmatprep.subr.mxu0 0.0
    %961 = vmatpush1.msra.mxu0 %v784
    %962 = vmatprep.subr.mxu0 0.0
    %963 = vmatpush1.msra.mxu0 %v783
    %964 = vmatprep.subr.mxu0 0.0
    %965 = vmatpush1.msra.mxu0 %v782
    %966 = vmatprep.subr.mxu0 0.0
    %967 = vmatpush1.msra.mxu0 %v781
    %968 = vmatprep.subr.mxu0 0.0
    %969 = vmatpush1.msra.mxu0 %v780
    %970 = vmatprep.subr.mxu0 0.0
    %971 = vmatpush1.msra.mxu0 %v779
    %972 = vmatprep.subr.mxu0 0.0
    %973 = vmatpush1.msra.mxu0 %v778
    %974 = vmatprep.subr.mxu0 0.0
    %975 = vmatpush1.msra.mxu0 %v777
    %976 = vmatprep.subr.mxu0 0.0
    %977 = vmatpush1.msra.mxu0 %v776
    %978 = vmatprep.subr.mxu0 0.0
    %979 = vmatpush1.msra.mxu0 %v775
    %980 = vmatprep.subr.mxu0 0.0
    %981 = vmatpush2.msra.mxu0 %v806
    %982 = vmatprep.subr.mxu0 0.0
    %983 = vmatpush2.msra.mxu0 %v805
    %984 = vmatprep.subr.mxu0 0.0
    %985 = vmatpush2.msra.mxu0 %v804
    %986 = vmatprep.subr.mxu0 0.0
    %987 = vmatpush2.msra.mxu0 %v803
    %988 = vmatprep.subr.mxu0 0.0
    %989 = vmatpush2.msra.mxu0 %v802
    %990 = vmatprep.subr.mxu0 0.0
    %991 = vmatpush2.msra.mxu0 %v801
    %992 = vmatprep.subr.mxu0 0.0
    %993 = vmatpush2.msra.mxu0 %v800
    %994 = vmatprep.subr.mxu0 0.0
    %995 = vmatpush2.msra.mxu0 %v799
    %996 = vmatprep.subr.mxu0 0.0
    %997 = vmatpush2.msra.mxu0 %v798
    %998 = vmatprep.subr.mxu0 0.0
    %999 = vmatpush2.msra.mxu0 %v797
    %1000 = vmatprep.subr.mxu0 0.0
    %1001 = vmatpush2.msra.mxu0 %v796
    %1002 = vmatprep.subr.mxu0 0.0
    %1003 = vmatpush2.msra.mxu0 %v795
    %1004 = vmatprep.subr.mxu0 0.0
    %1005 = vmatpush2.msra.mxu0 %v794
    %1006 = vmatprep.subr.mxu0 0.0
    %1007 = vmatpush2.msra.mxu0 %v793
    %1008 = vmatprep.subr.mxu0 0.0
    %1009 = vmatpush2.msra.mxu0 %v792
    %1010 = vmatprep.subr.mxu0 0.0
    %1011 = vmatpush2.msra.mxu0 %v791
    %1012 = vmatprep.mubr.f32.mxu0 %v765
    %1013 = vmatmul.mubr.f32.gmra.mxu0 %v764
    %v1014 = vpop.f32.mrf.mxu0
    %v1015 = vadd.f32 %v942, %v1014
    %v1016 = vpop.f32.mrf.mxu0
    %1017 = vdwg.mxu0
    %1018 = vmatprep.subr.mxu0 0.0
    %1019 = vmatpush1.msra.mxu0 %v822
    %1020 = vmatprep.subr.mxu0 0.0
    %1021 = vmatpush1.msra.mxu0 %v821
    %1022 = vmatprep.subr.mxu0 0.0
    %1023 = vmatpush1.msra.mxu0 %v820
    %1024 = vmatprep.subr.mxu0 0.0
    %1025 = vmatpush1.msra.mxu0 %v819
    %1026 = vmatprep.subr.mxu0 0.0
    %1027 = vmatpush1.msra.mxu0 %v818
    %1028 = vmatprep.subr.mxu0 0.0
    %1029 = vmatpush1.msra.mxu0 %v817
    %1030 = vmatprep.subr.mxu0 0.0
    %1031 = vmatpush1.msra.mxu0 %v816
    %1032 = vmatprep.subr.mxu0 0.0
    %1033 = vmatpush1.msra.mxu0 %v815
    %1034 = vmatprep.subr.mxu0 0.0
    %1035 = vmatpush1.msra.mxu0 %v814
    %1036 = vmatprep.subr.mxu0 0.0
    %1037 = vmatpush1.msra.mxu0 %v813
    %1038 = vmatprep.subr.mxu0 0.0
    %1039 = vmatpush1.msra.mxu0 %v812
    %1040 = vmatprep.subr.mxu0 0.0
    %1041 = vmatpush1.msra.mxu0 %v811
    %1042 = vmatprep.subr.mxu0 0.0
    %1043 = vmatpush1.msra.mxu0 %v810
    %1044 = vmatprep.subr.mxu0 0.0
    %1045 = vmatpush1.msra.mxu0 %v809
    %1046 = vmatprep.subr.mxu0 0.0
    %1047 = vmatpush1.msra.mxu0 %v808
    %1048 = vmatprep.subr.mxu0 0.0
    %1049 = vmatpush1.msra.mxu0 %v807
    %1050 = vmatprep.subr.mxu0 0.0
    %1051 = vmatpush2.msra.mxu0 %v838
    %1052 = vmatprep.subr.mxu0 0.0
    %1053 = vmatpush2.msra.mxu0 %v837
    %1054 = vmatprep.subr.mxu0 0.0
    %1055 = vmatpush2.msra.mxu0 %v836
    %1056 = vmatprep.subr.mxu0 0.0
    %1057 = vmatpush2.msra.mxu0 %v835
    %1058 = vmatprep.subr.mxu0 0.0
    %1059 = vmatpush2.msra.mxu0 %v834
    %1060 = vmatprep.subr.mxu0 0.0
    %1061 = vmatpush2.msra.mxu0 %v833
    %1062 = vmatprep.subr.mxu0 0.0
    %1063 = vmatpush2.msra.mxu0 %v832
    %1064 = vmatprep.subr.mxu0 0.0
    %1065 = vmatpush2.msra.mxu0 %v831
    %1066 = vmatprep.subr.mxu0 0.0
    %1067 = vmatpush2.msra.mxu0 %v830
    %1068 = vmatprep.subr.mxu0 0.0
    %1069 = vmatpush2.msra.mxu0 %v829
    %1070 = vmatprep.subr.mxu0 0.0
    %1071 = vmatpush2.msra.mxu0 %v828
    %1072 = vmatprep.subr.mxu0 0.0
    %1073 = vmatpush2.msra.mxu0 %v827
    %1074 = vmatprep.subr.mxu0 0.0
    %1075 = vmatpush2.msra.mxu0 %v826
    %1076 = vmatprep.subr.mxu0 0.0
    %1077 = vmatpush2.msra.mxu0 %v825
    %1078 = vmatprep.subr.mxu0 0.0
    %1079 = vmatpush2.msra.mxu0 %v824
    %1080 = vmatprep.subr.mxu0 0.0
    %1081 = vmatpush2.msra.mxu0 %v823
    %1082 = vmatprep.mubr.f32.mxu0 %v767
    %1083 = vmatmul.mubr.f32.gmra.mxu0 %v766
    %v1084 = vpop.f32.mrf.mxu0
    %v1085 = vadd.f32 %v1015, %v1084
    %v1086 = vpop.f32.mrf.mxu0
    %1087 = vdwg.mxu0
    %1088 = vmatprep.subr.mxu0 0.0
    %1089 = vmatpush1.msra.mxu0 %v854
    %1090 = vmatprep.subr.mxu0 0.0
    %1091 = vmatpush1.msra.mxu0 %v853
    %1092 = vmatprep.subr.mxu0 0.0
    %1093 = vmatpush1.msra.mxu0 %v852
    %1094 = vmatprep.subr.mxu0 0.0
    %1095 = vmatpush1.msra.mxu0 %v851
    %1096 = vmatprep.subr.mxu0 0.0
    %1097 = vmatpush1.msra.mxu0 %v850
    %1098 = vmatprep.subr.mxu0 0.0
    %1099 = vmatpush1.msra.mxu0 %v849
    %1100 = vmatprep.subr.mxu0 0.0
    %1101 = vmatpush1.msra.mxu0 %v848
    %1102 = vmatprep.subr.mxu0 0.0
    %1103 = vmatpush1.msra.mxu0 %v847
    %1104 = vmatprep.subr.mxu0 0.0
    %1105 = vmatpush1.msra.mxu0 %v846
    %1106 = vmatprep.subr.mxu0 0.0
    %1107 = vmatpush1.msra.mxu0 %v845
    %1108 = vmatprep.subr.mxu0 0.0
    %1109 = vmatpush1.msra.mxu0 %v844
    %1110 = vmatprep.subr.mxu0 0.0
    %1111 = vmatpush1.msra.mxu0 %v843
    %1112 = vmatprep.subr.mxu0 0.0
    %1113 = vmatpush1.msra.mxu0 %v842
    %1114 = vmatprep.subr.mxu0 0.0
    %1115 = vmatpush1.msra.mxu0 %v841
    %1116 = vmatprep.subr.mxu0 0.0
    %1117 = vmatpush1.msra.mxu0 %v840
    %1118 = vmatprep.subr.mxu0 0.0
    %1119 = vmatpush1.msra.mxu0 %v839
    %1120 = vmatprep.subr.mxu0 0.0
    %1121 = vmatpush2.msra.mxu0 %v870
    %1122 = vmatprep.subr.mxu0 0.0
    %1123 = vmatpush2.msra.mxu0 %v869
    %1124 = vmatprep.subr.mxu0 0.0
    %1125 = vmatpush2.msra.mxu0 %v868
    %1126 = vmatprep.subr.mxu0 0.0
    %1127 = vmatpush2.msra.mxu0 %v867
    %1128 = vmatprep.subr.mxu0 0.0
    %1129 = vmatpush2.msra.mxu0 %v866
    %1130 = vmatprep.subr.mxu0 0.0
    %1131 = vmatpush2.msra.mxu0 %v865
    %1132 = vmatprep.subr.mxu0 0.0
    %1133 = vmatpush2.msra.mxu0 %v864
    %1134 = vmatprep.subr.mxu0 0.0
    %1135 = vmatpush2.msra.mxu0 %v863
    %1136 = vmatprep.subr.mxu0 0.0
    %1137 = vmatpush2.msra.mxu0 %v862
    %1138 = vmatprep.subr.mxu0 0.0
    %1139 = vmatpush2.msra.mxu0 %v861
    %1140 = vmatprep.subr.mxu0 0.0
    %1141 = vmatpush2.msra.mxu0 %v860
    %1142 = vmatprep.subr.mxu0 0.0
    %1143 = vmatpush2.msra.mxu0 %v859
    %1144 = vmatprep.subr.mxu0 0.0
    %1145 = vmatpush2.msra.mxu0 %v858
    %1146 = vmatprep.subr.mxu0 0.0
    %1147 = vmatpush2.msra.mxu0 %v857
    %1148 = vmatprep.subr.mxu0 0.0
    %1149 = vmatpush2.msra.mxu0 %v856
    %1150 = vmatprep.subr.mxu0 0.0
    %1151 = vmatpush2.msra.mxu0 %v855
    %1152 = vmatprep.mubr.f32.mxu0 %v769
    %1153 = vmatmul.mubr.f32.gmra.mxu0 %v768
    %v1154 = vpop.f32.mrf.mxu0
    %v1155 = vadd.f32 %v1085, %v1154
    %v1156 = vpop.f32.mrf.mxu0
    %1157 = vdwg.mxu0
    %1158 = vmatprep.subr.mxu0 0.0
    %1159 = vmatpush1.msra.mxu0 %v886
    %1160 = vmatprep.subr.mxu0 0.0
    %1161 = vmatpush1.msra.mxu0 %v885
    %1162 = vmatprep.subr.mxu0 0.0
    %1163 = vmatpush1.msra.mxu0 %v884
    %1164 = vmatprep.subr.mxu0 0.0
    %1165 = vmatpush1.msra.mxu0 %v883
    %1166 = vmatprep.subr.mxu0 0.0
    %1167 = vmatpush1.msra.mxu0 %v882
    %1168 = vmatprep.subr.mxu0 0.0
    %1169 = vmatpush1.msra.mxu0 %v881
    %1170 = vmatprep.subr.mxu0 0.0
    %1171 = vmatpush1.msra.mxu0 %v880
    %1172 = vmatprep.subr.mxu0 0.0
    %1173 = vmatpush1.msra.mxu0 %v879
    %1174 = vmatprep.subr.mxu0 0.0
    %1175 = vmatpush1.msra.mxu0 %v878
    %1176 = vmatprep.subr.mxu0 0.0
    %1177 = vmatpush1.msra.mxu0 %v877
    %1178 = vmatprep.subr.mxu0 0.0
    %1179 = vmatpush1.msra.mxu0 %v876
    %1180 = vmatprep.subr.mxu0 0.0
    %1181 = vmatpush1.msra.mxu0 %v875
    %1182 = vmatprep.subr.mxu0 0.0
    %1183 = vmatpush1.msra.mxu0 %v874
    %1184 = vmatprep.subr.mxu0 0.0
    %1185 = vmatpush1.msra.mxu0 %v873
    %1186 = vmatprep.subr.mxu0 0.0
    %1187 = vmatpush1.msra.mxu0 %v872
    %1188 = vmatprep.subr.mxu0 0.0
    %1189 = vmatpush1.msra.mxu0 %v871
    %1190 = vmatprep.subr.mxu0 0.0
    %1191 = vmatpush2.msra.mxu0 %v902
    %1192 = vmatprep.subr.mxu0 0.0
    %1193 = vmatpush2.msra.mxu0 %v901
    %1194 = vmatprep.subr.mxu0 0.0
    %1195 = vmatpush2.msra.mxu0 %v900
    %1196 = vmatprep.subr.mxu0 0.0
    %1197 = vmatpush2.msra.mxu0 %v899
    %1198 = vmatprep.subr.mxu0 0.0
    %1199 = vmatpush2.msra.mxu0 %v898
    %1200 = vmatprep.subr.mxu0 0.0
    %1201 = vmatpush2.msra.mxu0 %v897
    %1202 = vmatprep.subr.mxu0 0.0
    %1203 = vmatpush2.msra.mxu0 %v896
    %1204 = vmatprep.subr.mxu0 0.0
    %1205 = vmatpush2.msra.mxu0 %v895
    %1206 = vmatprep.subr.mxu0 0.0
    %1207 = vmatpush2.msra.mxu0 %v894
    %1208 = vmatprep.subr.mxu0 0.0
    %1209 = vmatpush2.msra.mxu0 %v893
    %1210 = vmatprep.subr.mxu0 0.0
    %1211 = vmatpush2.msra.mxu0 %v892
    %1212 = vmatprep.subr.mxu0 0.0
    %1213 = vmatpush2.msra.mxu0 %v891
    %1214 = vmatprep.subr.mxu0 0.0
    %1215 = vmatpush2.msra.mxu0 %v890
    %1216 = vmatprep.subr.mxu0 0.0
    %1217 = vmatpush2.msra.mxu0 %v889
    %1218 = vmatprep.subr.mxu0 0.0
    %1219 = vmatpush2.msra.mxu0 %v888
    %1220 = vmatprep.subr.mxu0 0.0
    %1221 = vmatpush2.msra.mxu0 %v887
    %1222 = vmatprep.mubr.f32.mxu0 %v771
    %1223 = vmatmul.mubr.f32.gmra.mxu0 %v770
    %v1224 = vpop.f32.mrf.mxu0
    %v1225 = vadd.f32 %v1155, %v1224
    %v1226 = vpop.f32.mrf.mxu0
    %1227 = vdwg.mxu0
    %1228 = vmatprep.subr.mxu0 0.0
    %1229 = vmatpush1.msra.mxu0 %v918
    %1230 = vmatprep.subr.mxu0 0.0
    %1231 = vmatpush1.msra.mxu0 %v917
    %1232 = vmatprep.subr.mxu0 0.0
    %1233 = vmatpush1.msra.mxu0 %v916
    %1234 = vmatprep.subr.mxu0 0.0
    %1235 = vmatpush1.msra.mxu0 %v915
    %1236 = vmatprep.subr.mxu0 0.0
    %1237 = vmatpush1.msra.mxu0 %v914
    %1238 = vmatprep.subr.mxu0 0.0
    %1239 = vmatpush1.msra.mxu0 %v913
    %1240 = vmatprep.subr.mxu0 0.0
    %1241 = vmatpush1.msra.mxu0 %v912
    %1242 = vmatprep.subr.mxu0 0.0
    %1243 = vmatpush1.msra.mxu0 %v911
    %1244 = vmatprep.subr.mxu0 0.0
    %1245 = vmatpush1.msra.mxu0 %v910
    %1246 = vmatprep.subr.mxu0 0.0
    %1247 = vmatpush1.msra.mxu0 %v909
    %1248 = vmatprep.subr.mxu0 0.0
    %1249 = vmatpush1.msra.mxu0 %v908
    %1250 = vmatprep.subr.mxu0 0.0
    %1251 = vmatpush1.msra.mxu0 %v907
    %1252 = vmatprep.subr.mxu0 0.0
    %1253 = vmatpush1.msra.mxu0 %v906
    %1254 = vmatprep.subr.mxu0 0.0
    %1255 = vmatpush1.msra.mxu0 %v905
    %1256 = vmatprep.subr.mxu0 0.0
    %1257 = vmatpush1.msra.mxu0 %v904
    %1258 = vmatprep.subr.mxu0 0.0
    %1259 = vmatpush1.msra.mxu0 %v903
    %1260 = vmatprep.subr.mxu0 0.0
    %1261 = vmatpush2.msra.mxu0 %v934
    %1262 = vmatprep.subr.mxu0 0.0
    %1263 = vmatpush2.msra.mxu0 %v933
    %1264 = vmatprep.subr.mxu0 0.0
    %1265 = vmatpush2.msra.mxu0 %v932
    %1266 = vmatprep.subr.mxu0 0.0
    %1267 = vmatpush2.msra.mxu0 %v931
    %1268 = vmatprep.subr.mxu0 0.0
    %1269 = vmatpush2.msra.mxu0 %v930
    %1270 = vmatprep.subr.mxu0 0.0
    %1271 = vmatpush2.msra.mxu0 %v929
    %1272 = vmatprep.subr.mxu0 0.0
    %1273 = vmatpush2.msra.mxu0 %v928
    %1274 = vmatprep.subr.mxu0 0.0
    %1275 = vmatpush2.msra.mxu0 %v927
    %1276 = vmatprep.subr.mxu0 0.0
    %1277 = vmatpush2.msra.mxu0 %v926
    %1278 = vmatprep.subr.mxu0 0.0
    %1279 = vmatpush2.msra.mxu0 %v925
    %1280 = vmatprep.subr.mxu0 0.0
    %1281 = vmatpush2.msra.mxu0 %v924
    %1282 = vmatprep.subr.mxu0 0.0
    %1283 = vmatpush2.msra.mxu0 %v923
    %1284 = vmatprep.subr.mxu0 0.0
    %1285 = vmatpush2.msra.mxu0 %v922
    %1286 = vmatprep.subr.mxu0 0.0
    %1287 = vmatpush2.msra.mxu0 %v921
    %1288 = vmatprep.subr.mxu0 0.0
    %1289 = vmatpush2.msra.mxu0 %v920
    %1290 = vmatprep.subr.mxu0 0.0
    %1291 = vmatpush2.msra.mxu0 %v919
    %1292 = vmatprep.mubr.f32.mxu0 %v773
    %1293 = vmatmul.mubr.f32.gmra.mxu0 %v772
    %v1294 = vpop.f32.mrf.mxu0
    %v1295 = vadd.f32 %v1225, %v1294
    %v1296 = vpop.f32.mrf.mxu0
    %1297 = vdwg.mxu0
    %1298 = vmatprep.subr.mxu0 0.0
    %1299 = vmatpush1.msra.mxu0 0.0
    %1300 = vmatprep.subr.mxu0 0.0
    %1301 = vmatpush1.msra.mxu0 0.0
    %1302 = vmatprep.subr.mxu0 0.0
    %1303 = vmatpush1.msra.mxu0 0.0
    %1304 = vmatprep.subr.mxu0 0.0
    %1305 = vmatpush1.msra.mxu0 0.0
    %1306 = vmatprep.subr.mxu0 0.0
    %1307 = vmatpush1.msra.mxu0 0.0
    %1308 = vmatprep.subr.mxu0 0.0
    %1309 = vmatpush1.msra.mxu0 0.0
    %1310 = vmatprep.subr.mxu0 0.0
    %1311 = vmatpush1.msra.mxu0 0.0
    %1312 = vmatprep.subr.mxu0 0.0
    %1313 = vmatpush1.msra.mxu0 0.0
    %1314 = vmatprep.subr.mxu0 0.0
    %1315 = vmatpush1.msra.mxu0 0.0
    %1316 = vmatprep.subr.mxu0 0.0
    %1317 = vmatpush1.msra.mxu0 0.0
    %1318 = vmatprep.subr.mxu0 0.0
    %1319 = vmatpush1.msra.mxu0 0.0
    %1320 = vmatprep.subr.mxu0 0.0
    %1321 = vmatpush1.msra.mxu0 0.0
    %1322 = vmatprep.subr.mxu0 0.0
    %1323 = vmatpush1.msra.mxu0 0.0
    %1324 = vmatprep.subr.mxu0 0.0
    %1325 = vmatpush1.msra.mxu0 0.0
    %1326 = vmatprep.subr.mxu0 0.0
    %1327 = vmatpush1.msra.mxu0 %v936
    %1328 = vmatprep.subr.mxu0 0.0
    %1329 = vmatpush1.msra.mxu0 %v935
    %1330 = vmatprep.subr.mxu0 0.0
    %1331 = vmatpush2.msra.mxu0 0.0
    %1332 = vmatprep.subr.mxu0 0.0
    %1333 = vmatpush2.msra.mxu0 0.0
    %1334 = vmatprep.subr.mxu0 0.0
    %1335 = vmatpush2.msra.mxu0 0.0
    %1336 = vmatprep.subr.mxu0 0.0
    %1337 = vmatpush2.msra.mxu0 0.0
    %1338 = vmatprep.subr.mxu0 0.0
    %1339 = vmatpush2.msra.mxu0 0.0
    %1340 = vmatprep.subr.mxu0 0.0
    %1341 = vmatpush2.msra.mxu0 0.0
    %1342 = vmatprep.subr.mxu0 0.0
    %1343 = vmatpush2.msra.mxu0 0.0
    %1344 = vmatprep.subr.mxu0 0.0
    %1345 = vmatpush2.msra.mxu0 0.0
    %1346 = vmatprep.subr.mxu0 0.0
    %1347 = vmatpush2.msra.mxu0 0.0
    %1348 = vmatprep.subr.mxu0 0.0
    %1349 = vmatpush2.msra.mxu0 0.0
    %1350 = vmatprep.subr.mxu0 0.0
    %1351 = vmatpush2.msra.mxu0 0.0
    %1352 = vmatprep.subr.mxu0 0.0
    %1353 = vmatpush2.msra.mxu0 0.0
    %1354 = vmatprep.subr.mxu0 0.0
    %1355 = vmatpush2.msra.mxu0 0.0
    %1356 = vmatprep.subr.mxu0 0.0
    %1357 = vmatpush2.msra.mxu0 0.0
    %1358 = vmatprep.subr.mxu0 0.0
    %1359 = vmatpush2.msra.mxu0 0.0
    %1360 = vmatprep.subr.mxu0 0.0
    %1361 = vmatpush2.msra.mxu0 0.0
    %1362 = vmatprep.mubr.f32.mxu0 0.0
    %1363 = vmatmul.mubr.f32.gmra.mxu0 %v946
    %v1364 = vpop.f32.mrf.mxu0
    %v1365 = vadd.f32 %v1295, %v1364
    %v1366 = vpop.f32.mrf.mxu0
    %1367 = vdwg.mxu0
    %v1368 = vld [vmem:[%s7] sm:$0xff]
    %v1369 = vld [vmem:[%s7 + $0x8] sm:$0xff]
    %v1370 = vld [vmem:[%s7 + $0x10] sm:$0xff]
    %v1371 = vld [vmem:[%s7 + $0x18] sm:$0xff]
    %v1372 = vld [vmem:[%s7 + $0x20] sm:$0xff]
    %v1373 = vld [vmem:[%s7 + $0x28] sm:$0xff]
    %v1374 = vld [vmem:[%s7 + $0x30] sm:$0xff]
    %v1375 = vld [vmem:[%s7 + $0x38] sm:$0xff]
    %v1376 = vld [vmem:[%s7 + $0x40] sm:$0xff]
    %v1377 = vld [vmem:[%s7 + $0x48] sm:$0xff]
    %v1378 = vld [vmem:[%s7 + $0x50] sm:$0x1]
    %v1379 = vld [vmem:[%s8] sm:$0x1]
    %v1381 = vlaneseq
    %v1382 = vshrl.u32 %v1381, 7
    %v1383 = vsub.s32 0, %v1382
    %v1384 = vrot.slane %v1379, %v1383
    %v1387 = vsel %vm333, %v1365, 0
    %v1390 = vsel %vm763, %v1378, 0
    %1392 = vmatprep.subr.mxu0 0.0
    %1393 = vmatpush1.msra.mxu0 0.0
    %1394 = vmatprep.subr.mxu0 0.0
    %1395 = vmatpush1.msra.mxu0 0.0
    %1396 = vmatprep.subr.mxu0 0.0
    %1397 = vmatpush1.msra.mxu0 0.0
    %1398 = vmatprep.subr.mxu0 0.0
    %1399 = vmatpush1.msra.mxu0 0.0
    %1400 = vmatprep.subr.mxu0 0.0
    %1401 = vmatpush1.msra.mxu0 0.0
    %1402 = vmatprep.subr.mxu0 0.0
    %1403 = vmatpush1.msra.mxu0 %v1390
    %1404 = vmatprep.subr.mxu0 0.0
    %1405 = vmatpush1.msra.mxu0 %v1377
    %1406 = vmatprep.subr.mxu0 0.0
    %1407 = vmatpush1.msra.mxu0 %v1376
    %1408 = vmatprep.subr.mxu0 0.0
    %1409 = vmatpush1.msra.mxu0 %v1375
    %1410 = vmatprep.subr.mxu0 0.0
    %1411 = vmatpush1.msra.mxu0 %v1374
    %1412 = vmatprep.subr.mxu0 0.0
    %1413 = vmatpush1.msra.mxu0 %v1373
    %1414 = vmatprep.subr.mxu0 0.0
    %1415 = vmatpush1.msra.mxu0 %v1372
    %1416 = vmatprep.subr.mxu0 0.0
    %1417 = vmatpush1.msra.mxu0 %v1371
    %1418 = vmatprep.subr.mxu0 0.0
    %1419 = vmatpush1.msra.mxu0 %v1370
    %1420 = vmatprep.subr.mxu0 0.0
    %1421 = vmatpush1.msra.mxu0 %v1369
    %1422 = vmatprep.subr.mxu0 0.0
    %1423 = vmatpush1.msra.mxu0 %v1368
    %1424 = vmatprep.subr.mxu0 0.0
    %1425 = vmatpush2.msra.mxu0 0.0
    %1426 = vmatprep.subr.mxu0 0.0
    %1427 = vmatpush2.msra.mxu0 0.0
    %1428 = vmatprep.subr.mxu0 0.0
    %1429 = vmatpush2.msra.mxu0 0.0
    %1430 = vmatprep.subr.mxu0 0.0
    %1431 = vmatpush2.msra.mxu0 0.0
    %1432 = vmatprep.subr.mxu0 0.0
    %1433 = vmatpush2.msra.mxu0 0.0
    %1434 = vmatprep.subr.mxu0 0.0
    %1435 = vmatpush2.msra.mxu0 0.0
    %1436 = vmatprep.subr.mxu0 0.0
    %1437 = vmatpush2.msra.mxu0 0.0
    %1438 = vmatprep.subr.mxu0 0.0
    %1439 = vmatpush2.msra.mxu0 0.0
    %1440 = vmatprep.subr.mxu0 0.0
    %1441 = vmatpush2.msra.mxu0 0.0
    %1442 = vmatprep.subr.mxu0 0.0
    %1443 = vmatpush2.msra.mxu0 0.0
    %1444 = vmatprep.subr.mxu0 0.0
    %1445 = vmatpush2.msra.mxu0 0.0
    %1446 = vmatprep.subr.mxu0 0.0
    %1447 = vmatpush2.msra.mxu0 0.0
    %1448 = vmatprep.subr.mxu0 0.0
    %1449 = vmatpush2.msra.mxu0 0.0
    %1450 = vmatprep.subr.mxu0 0.0
    %1451 = vmatpush2.msra.mxu0 0.0
    %1452 = vmatprep.subr.mxu0 0.0
    %1453 = vmatpush2.msra.mxu0 0.0
    %1454 = vmatprep.subr.mxu0 0.0
    %1455 = vmatpush2.msra.mxu0 0.0
    %1456 = vmatprep.mubr.f32.mxu0 0.0
    %1457 = vmatmul.mubr.f32.gmra.mxu0 %v1387
    %v1458 = vpop.f32.mrf.mxu0
    %v1459 = vadd.f32 %v1384, %v1458
    %v1460 = vpop.f32.mrf.mxu0
    %1461 = vdwg.mxu0
    %vm1462 = vcmask 33792
    %1463 = vst.msk [vmem:[#allocation2] sm:$0x3] %vm1462, %v1459
    // Predicated region
    $region38: #{net_forward.1} parent=1 // pred_check
      _
    $region39: #{net_forward.1} parent=1 // pred_check_branch
      %1465 = sbr.rel (0) target = $region41
    $region40: #{net_forward.1} parent=1 // pred_region
      %s1467 = ssub.s32 32, 32
      %1468 = vsyncadd [#allocation3], %s1467
      %s1470 = sshll.u32 [#allocation2], 4
      %s1471 = int_to_ptr.vmem [resolvable:$true] %s1470
      %1473 = dma.vmem_to_hbm [thread:$0]  %s1471, 32, %s9, [#allocation3]
    $region41: #{net_forward.1} parent=1 // pred_fallthru
      _
    // Predicated region
    $region42: #{net_forward.1} parent=1 // pred_check
      _
    $region43: #{net_forward.1} parent=1 // pred_check_branch
      %1475 = sbr.rel (0) target = $region45
    $region44: #{net_forward.1} parent=1 // pred_region
      %1476 = dma.done [#allocation3], 32
    $region45: #{net_forward.1} parent=1 // pred_fallthru
      _
    %1477 = vsyncpa [#allocation3], 1

</llo_original>
